<compile_context>
chip_gen: v7x
topology: tpu7x:2x2x1
jax: 0.10.0
libtpu: 0.0.40
codegen_flags: <defaults>
</compile_context>

<pallas_src>
import functools

import jax
import jax.numpy as jnp
from jax.experimental import pallas as pl
from jax.experimental.pallas import tpu as pltpu

LANE = 128
_NEG_BIG = -1e30  # bias on padded action columns -> exp() underflows to exactly 0


def _round_up(x, m):
    return (x + m - 1) // m * m


# --------------------------------------------------------------------------- #
# Kernel
# --------------------------------------------------------------------------- #
def _opponent_kernel(obs_ref, tgt_ref,
                     w1_ref, b1_ref, w2_ref, b2_ref, w3_ref, b3_ref,
                     out_ref, *, approx_recip):
    cd = w1_ref.dtype

    # ---- MLP hot path: MXU matmuls with f32 accumulation ----
    x = obs_ref[...].astype(cd)                                        # (tb, S)
    h1 = jnp.dot(x, w1_ref[...], preferred_element_type=jnp.float32)
    h1 = jnp.maximum(h1 + b1_ref[...], 0.0).astype(cd)
    h2 = jnp.dot(h1, w2_ref[...], preferred_element_type=jnp.float32)
    h2 = jnp.maximum(h2 + b2_ref[...], 0.0).astype(cd)
    logits = jnp.dot(h2, w3_ref[...], preferred_element_type=jnp.float32)
    logits = logits + b3_ref[...]                    # padded action cols get -1e30

    # ---- softmax stats; divide deferred to the K gathered values only ----
    m = jnp.max(logits, axis=-1, keepdims=True)
    e = jnp.exp(logits - m)                                            # (tb, Ap)
    inv_denom = pl.reciprocal(jnp.sum(e, axis=-1, keepdims=True),
                              approx=approx_recip)

    # ---- gather(1, target): one-hot mask + lane reduce ----
    tb, a_pad = e.shape
    num_gather = tgt_ref.shape[1]                                      # static, tiny
    tgt = tgt_ref[...]                                                 # (tb, K) int32
    col_ids = jax.lax.broadcasted_iota(jnp.int32, (tb, a_pad), 1)

    cols = []
    for k in range(num_gather):                       # K is static (often 1)
        sel = jnp.where(col_ids == tgt[:, k:k + 1], e, 0.0)            # (tb, Ap)
        cols.append(jnp.sum(sel, axis=-1, keepdims=True) * inv_denom)  # (tb, 1)
    gathered = cols[0] if num_gather == 1 else jnp.concatenate(cols, axis=-1)

    # Lane-dense output tile (K, tb); the small (tb, K)->(K, tb) transpose rides
    # the XLU slot, which has slack in this kernel.
    out_ref[...] = jnp.transpose(gathered).astype(out_ref.dtype)


# --------------------------------------------------------------------------- #
# One-time parameter prep (hoisted out of the hot path)
# --------------------------------------------------------------------------- #
def prepare_params(params, compute_dtype=jnp.bfloat16):
    """Lane-pad hidden/action dims, cast matmul weights to the compute dtype,
    keep biases f32.  Call once and reuse across forward calls."""
    w1, b1, w2, b2, w3, b3 = params
    S, H = w1.shape
    A = w3.shape[1]
    Hp, Ap = _round_up(H, LANE), _round_up(A, LANE)
    cd = jnp.dtype(compute_dtype)
    f32 = jnp.float32

    w1p = jnp.zeros((S, Hp), cd).at[:, :H].set(w1.astype(cd))          # S stays unpadded
    b1p = jnp.zeros((1, Hp), f32).at[:, :H].set(jnp.reshape(b1, (1, H)).astype(f32))
    w2p = jnp.zeros((Hp, Hp), cd).at[:H, :H].set(w2.astype(cd))
    b2p = jnp.zeros((1, Hp), f32).at[:, :H].set(jnp.reshape(b2, (1, H)).astype(f32))
    w3p = jnp.zeros((Hp, Ap), cd).at[:H, :A].set(w3.astype(cd))
    b3p = jnp.full((1, Ap), _NEG_BIG, f32).at[:, :A].set(
        jnp.reshape(b3, (1, A)).astype(f32))
    return (w1p, b1p, w2p, b2p, w3p, b3p)


# --------------------------------------------------------------------------- #
# Forward wrapper
# --------------------------------------------------------------------------- #
def opponent_forward(obs, target, prepared, *, batch_tile=None,
                     approx_recip=None, weight_buffer_count=None):
    """obs: (B, S), target: (B, K) int -> (B, K) gathered softmax probabilities.

    `prepared` comes from prepare_params().  weight_buffer_count=1 single-buffers
    the resident weights (v7x VMEM saver for large hidden dims)."""
    w1p, b1p, w2p, b2p, w3p, b3p = prepared
    B, S = obs.shape
    K = target.shape[1]
    Hp = w1p.shape[1]
    Ap = w3p.shape[1]
    cd = jnp.dtype(w1p.dtype)
    if approx_recip is None:
        approx_recip = cd != jnp.float32

    # ---- batch tiling: large lane/sublane-friendly tiles, >=2 grid steps at scale ----
    if batch_tile is None:
        tb = 256 if B <= 1024 else 512
    else:
        tb = int(batch_tile)
    tb = _round_up(max(tb, 16), 16)            # bf16 packs 16 rows per sublane tile
    tb = min(tb, _round_up(B, 16))             # don't over-pad tiny batches
    Bp = _round_up(B, tb)
    grid = (Bp // tb,)

    # Only the batch dim is padded (zero rows); obs keeps its dtype and width.
    obs_p = obs if Bp == B else jnp.zeros((Bp, S), obs.dtype).at[:B].set(obs)
    tgt = target.astype(jnp.int32)
    tgt_p = tgt if Bp == B else jnp.zeros((Bp, K), jnp.int32).at[:B].set(tgt)

    pm = None if weight_buffer_count is None else pl.Buffered(int(weight_buffer_count))

    def wspec(shape):
        if pm is None:
            return pl.BlockSpec(shape, lambda i: (0, 0))
        return pl.BlockSpec(shape, lambda i: (0, 0), pipeline_mode=pm)

    in_specs = [
        pl.BlockSpec((tb, S), lambda i: (i, 0)),    # obs tile (pipelined)
        pl.BlockSpec((tb, K), lambda i: (i, 0)),    # target tile (pipelined)
        wspec((S, Hp)), wspec((1, Hp)),             # resident weights / biases
        wspec((Hp, Hp)), wspec((1, Hp)),
        wspec((Hp, Ap)), wspec((1, Ap)),
    ]
    out_specs = pl.BlockSpec((K, tb), lambda i: (0, i))   # lane-dense along batch

    # ---- VMEM budget: weights x buffer_count + double-buffered I/O + activations ----
    wbc = 2 if weight_buffer_count is None else int(weight_buffer_count)
    w_bytes = ((S * Hp + Hp * Hp + Hp * Ap) * cd.itemsize + (2 * Hp + Ap) * 4) * wbc
    io_bytes = 2 * (tb * S * jnp.dtype(obs.dtype).itemsize + tb * K * 4 + K * tb * 4)
    act_bytes = tb * (2 * Hp + 2 * Ap) * 4
    need = w_bytes + io_bytes + act_bytes + (4 << 20)     # + compiler scratch slack
    try:
        phys = int(pltpu.get_tpu_info().vmem_capacity_bytes)
    except Exception:
        phys = 64 * 2 ** 20
    vmem_limit = int(min(phys * 3 // 4, max(32 * 2 ** 20, need)))

    out_kb = pl.pallas_call(
        functools.partial(_opponent_kernel, approx_recip=bool(approx_recip)),
        out_shape=jax.ShapeDtypeStruct((K, Bp), jnp.float32),
        grid_spec=pltpu.PrefetchScalarGridSpec(
            num_scalar_prefetch=0,
            grid=grid,
            in_specs=in_specs,
            out_specs=out_specs,
        ),
        compiler_params=pltpu.CompilerParams(
            dimension_semantics=("parallel",),
            vmem_limit_bytes=vmem_limit,
        ),
    )(obs_p, tgt_p, w1p, b1p, w2p, b2p, w3p, b3p)

    return jnp.transpose(out_kb[:, :B])                   # (B, K)


# --------------------------------------------------------------------------- #
# Synthetic init + pure-JAX reference
# --------------------------------------------------------------------------- #
def make_params(key, state_dim, hidden_dim, action_dim):
    """Mirrors the module: orthogonal (gain sqrt(2)) fc1/fc2 with zero bias;
    default-Linear uniform init for fc3.  Weights are (in_dim, out_dim)."""
    k1, k2, k3, k4 = jax.random.split(key, 4)
    gain = jnp.sqrt(2.0)
    ortho = jax.nn.initializers.orthogonal()

    w1 = gain * ortho(k1, (state_dim, hidden_dim), jnp.float32)
    b1 = jnp.zeros((1, hidden_dim), jnp.float32)
    w2 = gain * ortho(k2, (hidden_dim, hidden_dim), jnp.float32)
    b2 = jnp.zeros((1, hidden_dim), jnp.float32)

    bound = 1.0 / jnp.sqrt(jnp.float32(hidden_dim))
    w3 = jax.random.uniform(k3, (hidden_dim, action_dim), jnp.float32, -bound, bound)
    b3 = jax.random.uniform(k4, (1, action_dim), jnp.float32, -bound, bound)
    return (w1, b1, w2, b2, w3, b3)


def _reference(obs, target, params, compute_dtype=jnp.float32):
    w1, b1, w2, b2, w3, b3 = params
    cd = compute_dtype

    def lin(x, w, b):
        y = jnp.dot(x.astype(cd), w.astype(cd), preferred_element_type=jnp.float32)
        return y + jnp.reshape(b, (1, -1)).astype(jnp.float32)

    h1 = jax.nn.relu(lin(obs, w1, b1))
    h2 = jax.nn.relu(lin(h1, w2, b2))
    logits = lin(h2, w3, b3)
    probs = jax.nn.softmax(logits, axis=1)
    return jnp.take_along_axis(probs, target, axis=1)


if __name__ == "__main__":
    # Non-128-aligned feature dims exercise the padding path; batch=512 with the
    # default 256-wide tile gives a 2-step "parallel" grid (megacore-shardable).
    state_dim, hidden_dim, action_dim = 10, 64, 5
    batch, K = 512, 1

    key = jax.random.PRNGKey(0)
    k_obs, k_tgt, k_par = jax.random.split(key, 3)
    obs = jax.random.normal(k_obs, (batch, state_dim), jnp.float32)
    target = jax.random.randint(k_tgt, (batch, K), 0, action_dim, jnp.int32)
    params = make_params(k_par, state_dim, hidden_dim, action_dim)

    ref_f32 = _reference(obs, target, params, compute_dtype=jnp.float32)

    # 1) Strict f32 path (exact reciprocal) vs the PyTorch-equivalent reference.
    prep_f32 = prepare_params(params, compute_dtype=jnp.float32)
    out_f32 = jax.block_until_ready(
        opponent_forward(obs, target, prep_f32, approx_recip=False))
    assert out_f32.shape == (batch, K)
    assert jnp.allclose(out_f32, ref_f32, atol=1e-5, rtol=1e-5)

    # 2) Default bf16 MXU path (approx EUP reciprocal), checked vs a bf16-matmul
    #    reference and loosely vs the exact f32 probabilities.
    prep_bf16 = prepare_params(params, compute_dtype=jnp.bfloat16)
    out_bf16 = jax.block_until_ready(opponent_forward(obs, target, prep_bf16))
    ref_bf16 = _reference(obs, target, params, compute_dtype=jnp.bfloat16)
    assert jnp.allclose(out_bf16, ref_bf16, atol=1e-3, rtol=1e-2)
    assert jnp.allclose(out_bf16, ref_f32, atol=5e-2, rtol=0)

    # 3) Tiny batch (exercises batch padding + a single-step grid).
    out_small = jax.block_until_ready(
        opponent_forward(obs[:8], target[:8], prep_f32, approx_recip=False))
    assert jnp.allclose(out_small, ref_f32[:8], atol=1e-5, rtol=1e-5)

    # 4) Optional: single-buffered resident weights (v7x VMEM saver at large
    #    hidden dims).  Falls back silently if this jax build rejects Buffered(1).
    try:
        out_sb = jax.block_until_ready(
            opponent_forward(obs, target, prep_bf16, weight_buffer_count=1))
        assert jnp.allclose(out_sb, out_bf16, atol=1e-6, rtol=1e-6)
    except Exception:
        pass  # TODO(synk): pl.Buffered(1) resident weights unsupported on this build.

    # NOTE: out-of-range target indices yield 0.0 here (PyTorch gather would raise).
    print("KERNEL_OK")
</pallas_src>

<mosaic_0001>
module attributes {stable_mosaic.version = 11 : i64} {
  func.func @_opponent_kernel(%arg0: i32, %arg1: memref<256x10xf32, #tpu.memory_space<vmem>>, %arg2: memref<256x1xi32, #tpu.memory_space<vmem>>, %arg3: memref<10x128xf32, #tpu.memory_space<vmem>>, %arg4: memref<1x128xf32, #tpu.memory_space<vmem>>, %arg5: memref<128x128xf32, #tpu.memory_space<vmem>>, %arg6: memref<1x128xf32, #tpu.memory_space<vmem>>, %arg7: memref<128x128xf32, #tpu.memory_space<vmem>>, %arg8: memref<1x128xf32, #tpu.memory_space<vmem>>, %arg9: memref<1x256xf32, #tpu.memory_space<vmem>>) attributes {dimension_semantics = [#tpu.dimension_semantics<parallel>], iteration_bounds = array<i64: 2>, scalar_prefetch = 0 : i64, scratch_operands = 0 : i64, tpu.core_type = #tpu.core_type<tc>, window_params = [{transform_indices = @transform_0, window_bounds = array<i64: 256, 10>}, {transform_indices = @transform_1, window_bounds = array<i64: 256, 1>}, {pipeline_mode = #tpu.pipeline_mode<synchronous>, transform_indices = @transform_2, window_bounds = array<i64: 10, 128>}, {pipeline_mode = #tpu.pipeline_mode<synchronous>, transform_indices = @transform_3, window_bounds = array<i64: 1, 128>}, {pipeline_mode = #tpu.pipeline_mode<synchronous>, transform_indices = @transform_4, window_bounds = array<i64: 128, 128>}, {pipeline_mode = #tpu.pipeline_mode<synchronous>, transform_indices = @transform_5, window_bounds = array<i64: 1, 128>}, {pipeline_mode = #tpu.pipeline_mode<synchronous>, transform_indices = @transform_6, window_bounds = array<i64: 128, 128>}, {pipeline_mode = #tpu.pipeline_mode<synchronous>, transform_indices = @transform_7, window_bounds = array<i64: 1, 128>}, {transform_indices = @transform_8, window_bounds = array<i64: 1, 256>}]} {
    %c0 = arith.constant 0 : index
    %c0_0 = arith.constant 0 : index
    %0 = vector.load %arg1[%c0, %c0_0] : memref<256x10xf32, #tpu.memory_space<vmem>>, vector<256x10xf32>
    %c0_1 = arith.constant 0 : index
    %c0_2 = arith.constant 0 : index
    %1 = vector.load %arg3[%c0_1, %c0_2] : memref<10x128xf32, #tpu.memory_space<vmem>>, vector<10x128xf32>
    %cst = arith.constant dense<0.000000e+00> : vector<256x128xf32>
    %2 = tpu.matmul %0, %1, %cst {dimension_numbers = #tpu.dot_dimension_numbers<[1], [0], [0], [1], [0, 0, 1, 1], [], []>} : vector<256x10xf32>, vector<10x128xf32>, vector<256x128xf32> -> vector<256x128xf32>
    %c0_3 = arith.constant 0 : index
    %c0_4 = arith.constant 0 : index
    %3 = vector.load %arg4[%c0_3, %c0_4] : memref<1x128xf32, #tpu.memory_space<vmem>>, vector<1x128xf32>
    %4 = vector.broadcast %3 : vector<1x128xf32> to vector<256x128xf32>
    %5 = arith.addf %2, %4 : vector<256x128xf32>
    %cst_5 = arith.constant 0.000000e+00 : f32
    %6 = vector.broadcast %cst_5 : f32 to vector<256x128xf32>
    %7 = arith.maximumf %5, %6 : vector<256x128xf32>
    %c0_6 = arith.constant 0 : index
    %c0_7 = arith.constant 0 : index
    %8 = vector.load %arg5[%c0_6, %c0_7] : memref<128x128xf32, #tpu.memory_space<vmem>>, vector<128x128xf32>
    %cst_8 = arith.constant dense<0.000000e+00> : vector<256x128xf32>
    %9 = tpu.matmul %7, %8, %cst_8 {dimension_numbers = #tpu.dot_dimension_numbers<[1], [0], [0], [1], [0, 0, 1, 1], [], []>} : vector<256x128xf32>, vector<128x128xf32>, vector<256x128xf32> -> vector<256x128xf32>
    %c0_9 = arith.constant 0 : index
    %c0_10 = arith.constant 0 : index
    %10 = vector.load %arg6[%c0_9, %c0_10] : memref<1x128xf32, #tpu.memory_space<vmem>>, vector<1x128xf32>
    %11 = vector.broadcast %10 : vector<1x128xf32> to vector<256x128xf32>
    %12 = arith.addf %9, %11 : vector<256x128xf32>
    %cst_11 = arith.constant 0.000000e+00 : f32
    %13 = vector.broadcast %cst_11 : f32 to vector<256x128xf32>
    %14 = arith.maximumf %12, %13 : vector<256x128xf32>
    %c0_12 = arith.constant 0 : index
    %c0_13 = arith.constant 0 : index
    %15 = vector.load %arg7[%c0_12, %c0_13] : memref<128x128xf32, #tpu.memory_space<vmem>>, vector<128x128xf32>
    %cst_14 = arith.constant dense<0.000000e+00> : vector<256x128xf32>
    %16 = tpu.matmul %14, %15, %cst_14 {dimension_numbers = #tpu.dot_dimension_numbers<[1], [0], [0], [1], [0, 0, 1, 1], [], []>} : vector<256x128xf32>, vector<128x128xf32>, vector<256x128xf32> -> vector<256x128xf32>
    %c0_15 = arith.constant 0 : index
    %c0_16 = arith.constant 0 : index
    %17 = vector.load %arg8[%c0_15, %c0_16] : memref<1x128xf32, #tpu.memory_space<vmem>>, vector<1x128xf32>
    %18 = vector.broadcast %17 : vector<1x128xf32> to vector<256x128xf32>
    %19 = arith.addf %16, %18 : vector<256x128xf32>
    %cst_17 = arith.constant dense<0xFF800000> : vector<256xf32>
    %20 = vector.multi_reduction <maximumf>, %19, %cst_17 [1] : vector<256x128xf32> to vector<256xf32>
    %21 = vector.shape_cast %20 : vector<256xf32> to vector<256x1xf32>
    %22 = vector.broadcast %21 : vector<256x1xf32> to vector<256x128xf32>
    %23 = arith.subf %19, %22 : vector<256x128xf32>
    %24 = math.exp %23 : vector<256x128xf32>
    %cst_18 = arith.constant dense<0.000000e+00> : vector<256xf32>
    %25 = vector.multi_reduction <add>, %24, %cst_18 [1] : vector<256x128xf32> to vector<256xf32>
    %26 = vector.shape_cast %25 : vector<256xf32> to vector<256x1xf32>
    %27 = tpu.reciprocal %26 : vector<256x1xf32> -> vector<256x1xf32>
    %c0_19 = arith.constant 0 : index
    %c0_20 = arith.constant 0 : index
    %28 = vector.load %arg2[%c0_19, %c0_20] : memref<256x1xi32, #tpu.memory_space<vmem>>, vector<256x1xi32>
    %29 = tpu.iota {dimensions = array<i32: 1>} : vector<256x128xi32>
    %30 = vector.broadcast %28 : vector<256x1xi32> to vector<256x128xi32>
    %31 = arith.cmpi eq, %29, %30 : vector<256x128xi32>
    %cst_21 = arith.constant 0.000000e+00 : f32
    %32 = vector.broadcast %cst_21 : f32 to vector<256x128xf32>
    %33 = arith.select %31, %24, %32 : vector<256x128xi1>, vector<256x128xf32>
    %cst_22 = arith.constant dense<0.000000e+00> : vector<256xf32>
    %34 = vector.multi_reduction <add>, %33, %cst_22 [1] : vector<256x128xf32> to vector<256xf32>
    %35 = vector.shape_cast %34 : vector<256xf32> to vector<256x1xf32>
    %36 = arith.mulf %35, %27 : vector<256x1xf32>
    %37 = tpu.transpose %36, [1, 0] : vector<256x1xf32> -> vector<1x256xf32>
    %c0_23 = arith.constant 0 : index
    %c0_24 = arith.constant 0 : index
    %38 = vector.load %arg9[%c0_23, %c0_24] : memref<1x256xf32, #tpu.memory_space<vmem>>, vector<1x256xf32>
    tpu.vector_store %arg9[%c0_23, %c0_24], %37 {strides = array<i32>} : memref<1x256xf32, #tpu.memory_space<vmem>>, vector<1x256xf32>,
    return
  }
  func.func @transform_0(%arg0: i32) -> (i32, i32) {
    %c0_i32 = arith.constant 0 : i32
    %c0_i32_0 = arith.constant 0 : i32
    return %arg0, %c0_i32 : i32, i32
  }
  func.func @transform_1(%arg0: i32) -> (i32, i32) {
    %c0_i32 = arith.constant 0 : i32
    %c0_i32_0 = arith.constant 0 : i32
    return %arg0, %c0_i32 : i32, i32
  }
  func.func @transform_2(%arg0: i32) -> (i32, i32) {
    %c0_i32 = arith.constant 0 : i32
    %c0_i32_0 = arith.constant 0 : i32
    %c0_i32_1 = arith.constant 0 : i32
    return %c0_i32, %c0_i32_0 : i32, i32
  }
  func.func @transform_3(%arg0: i32) -> (i32, i32) {
    %c0_i32 = arith.constant 0 : i32
    %c0_i32_0 = arith.constant 0 : i32
    %c0_i32_1 = arith.constant 0 : i32
    return %c0_i32, %c0_i32_0 : i32, i32
  }
  func.func @transform_4(%arg0: i32) -> (i32, i32) {
    %c0_i32 = arith.constant 0 : i32
    %c0_i32_0 = arith.constant 0 : i32
    %c0_i32_1 = arith.constant 0 : i32
    return %c0_i32, %c0_i32_0 : i32, i32
  }
  func.func @transform_5(%arg0: i32) -> (i32, i32) {
    %c0_i32 = arith.constant 0 : i32
    %c0_i32_0 = arith.constant 0 : i32
    %c0_i32_1 = arith.constant 0 : i32
    return %c0_i32, %c0_i32_0 : i32, i32
  }
  func.func @transform_6(%arg0: i32) -> (i32, i32) {
    %c0_i32 = arith.constant 0 : i32
    %c0_i32_0 = arith.constant 0 : i32
    %c0_i32_1 = arith.constant 0 : i32
    return %c0_i32, %c0_i32_0 : i32, i32
  }
  func.func @transform_7(%arg0: i32) -> (i32, i32) {
    %c0_i32 = arith.constant 0 : i32
    %c0_i32_0 = arith.constant 0 : i32
    %c0_i32_1 = arith.constant 0 : i32
    return %c0_i32, %c0_i32_0 : i32, i32
  }
  func.func @transform_8(%arg0: i32) -> (i32, i32) {
    %c0_i32 = arith.constant 0 : i32
    %c0_i32_0 = arith.constant 0 : i32
    return %c0_i32, %arg0 : i32, i32
  }
}

</mosaic_0001>

<llo_original>
// kernel: tpu_custom_call.1
$region0: #{tpu_custom_call.1}
  #allocation0 [shape = 'u32[]', space=smem, size = 0x4, offset = 0x4, fixed_abs, tag = 'smem constant byte address 0x4 - core index']
  #allocation1 [shape = 'u32[144,128]{1,0:T(1,128)}', space=vmem, size = 0x12000, scoped, tag = 'internal scratch']
  %s0 = inlined_call_operand.vmem [shape: f32[512,10], index: 0, kind: input, shape index: {}]
  %s1 = inlined_call_operand.vmem [shape: s32[512,1], index: 1, kind: input, shape index: {}]
  %s2 = inlined_call_operand.vmem [shape: f32[10,128], index: 2, kind: input, shape index: {}]
  %s3 = inlined_call_operand.vmem [shape: f32[1,128], index: 3, kind: input, shape index: {}]
  %s4 = inlined_call_operand.vmem [shape: f32[128,128], index: 4, kind: input, shape index: {}]
  %s5 = inlined_call_operand.vmem [shape: f32[1,128], index: 5, kind: input, shape index: {}]
  %s6 = inlined_call_operand.vmem [shape: f32[128,128], index: 6, kind: input, shape index: {}]
  %s7 = inlined_call_operand.vmem [shape: f32[1,128], index: 7, kind: input, shape index: {}]
  %s8 = inlined_call_operand.hbm [shape: f32[1,512], index: 8, kind: output, shape index: {}]
  %s9 = sld [smem:[#allocation0]]
  $region65: #{tpu_custom_call.1} parent=0
    _
  %s11 = ssub.s32 1, %s9
  %s12 = scalar_select 0, %s11, %s9
  $region1: #{tpu_custom_call.1} parent=0
    #allocation2 [shape = 'u8[2048]{0}', space=vmem, size = 0x800, scoped, tag = 'output window, operand 0']
    #allocation3 [shape = 's32[2]{0}', space=sflag, size = 0x8, scoped, tag = 'scoped memory for tpu_custom_call.1']
    %13 = vsyncpa [#allocation3], 0
    %s14 = scalar_lea.sflag [#allocation3], 1
    %15 = vsyncpa %s14, 0
    loop: start=0, step=1, limit=4
    $region2: #{tpu_custom_call.1} parent=1 // loop_pre_header
      _
    $region3: #{tpu_custom_call.1} parent=1 // loop_header
      %s17 = sphi 0, %s21
      %p18 = scmp.ge.s32.totalorder %s17, 4
      %s27 = sphi 0, %s29
      %s30 = sphi 0, %s27
      %s31 = sphi 0, %s30
      %s47 = sphi 0, %s31
      %s53 = sphi 0, %s55
      %s56 = sphi 0, %s53
      %s57 = sphi 0, %s56
      %s73 = sphi 0, %s57
      %s77 = sphi 0, %s77
      %s79 = sphi 0, %s77
      %s80 = sphi 0, %s79
      %s94 = sphi 0, %s80
      %s98 = sphi 0, %s98
      %s100 = sphi 0, %s98
      %s101 = sphi 0, %s100
      %s115 = sphi 0, %s101
      %s119 = sphi 0, %s119
      %s121 = sphi 0, %s119
      %s122 = sphi 0, %s121
      %s136 = sphi 0, %s122
      %s140 = sphi 0, %s140
      %s142 = sphi 0, %s140
      %s143 = sphi 0, %s142
      %s157 = sphi 0, %s143
      %s161 = sphi 0, %s161
      %s163 = sphi 0, %s161
      %s164 = sphi 0, %s163
      %s178 = sphi 0, %s164
      %s182 = sphi 0, %s182
      %s184 = sphi 0, %s182
      %s185 = sphi 0, %s184
      %s199 = sphi 0, %s185
      %s205 = sphi 0, %s207
      %s208 = sphi 0, %s205
      %s209 = sphi 0, %s208
      %s225 = sphi 0, %s209
    $region4: #{tpu_custom_call.1} parent=1 // loop_header_branch
      %20 = sbr.rel (%p18) target = $region8
    $region5: #{tpu_custom_call.1} parent=1 // loop_body
      %s22 = ssub.s32 %s17, 1
      %s23 = ssub.s32 %s17, 2
      %s24 = sadd.s32 %s17, 1
      %s25 = ssub.s32 %s17, %s24
      %p26 = scmp.eq.s32.totalorder %s25, 0
      %s28 = sadd.s32 %s27, 1
      %s29 = scalar_select %p26, %s27, %s28
      %p32 = pneg %p26
      %p33 = scmp.eq.s32.totalorder %s17, 1
      %p34 = por %p32, %p33
      %p35 = scmp.ne.s32.totalorder %s27, %s30
      %p36 = scmp.eq.s32.totalorder %s17, 0
      %p37 = por %p35, %p36
      %p38 = scmp.ne.s32.totalorder %s27, %s30
      %p39 = scmp.eq.s32.totalorder %s22, 1
      %p40 = por %p38, %p39
      %p41 = scmp.ne.s32.totalorder %s30, %s31
      %p42 = scmp.eq.s32.totalorder %s22, 0
      %p43 = por %p41, %p42
      %p44 = scmp.ne.s32.totalorder %s30, %s31
      %p45 = scmp.eq.s32.totalorder %s23, 1
      %p46 = por %p44, %p45
      %p48 = scmp.ne.s32.totalorder %s31, %s47
      %p49 = scmp.eq.s32.totalorder %s23, 0
      %p50 = por %p48, %p49
      %s51 = ssub.s32 %s17, %s24
      %p52 = scmp.eq.s32.totalorder %s51, 0
      %s54 = sadd.s32 %s53, 1
      %s55 = scalar_select %p52, %s53, %s54
      %p58 = pneg %p52
      %p59 = scmp.eq.s32.totalorder %s17, 1
      %p60 = por %p58, %p59
      %p61 = scmp.ne.s32.totalorder %s53, %s56
      %p62 = scmp.eq.s32.totalorder %s17, 0
      %p63 = por %p61, %p62
      %p64 = scmp.ne.s32.totalorder %s53, %s56
      %p65 = scmp.eq.s32.totalorder %s22, 1
      %p66 = por %p64, %p65
      %p67 = scmp.ne.s32.totalorder %s56, %s57
      %p68 = scmp.eq.s32.totalorder %s22, 0
      %p69 = por %p67, %p68
      %p70 = scmp.ne.s32.totalorder %s56, %s57
      %p71 = scmp.eq.s32.totalorder %s23, 1
      %p72 = por %p70, %p71
      %p74 = scmp.ne.s32.totalorder %s57, %s73
      %p75 = scmp.eq.s32.totalorder %s23, 0
      %p76 = por %p74, %p75
      %s78 = sadd.s32 %s77, 1
      %p81 = scmp.eq.s32.totalorder %s17, 1
      %p82 = scmp.ne.s32.totalorder %s77, %s79
      %p83 = scmp.eq.s32.totalorder %s17, 0
      %p84 = por %p82, %p83
      %p85 = scmp.ne.s32.totalorder %s77, %s79
      %p86 = scmp.eq.s32.totalorder %s22, 1
      %p87 = por %p85, %p86
      %p88 = scmp.ne.s32.totalorder %s79, %s80
      %p89 = scmp.eq.s32.totalorder %s22, 0
      %p90 = por %p88, %p89
      %p91 = scmp.ne.s32.totalorder %s79, %s80
      %p92 = scmp.eq.s32.totalorder %s23, 1
      %p93 = por %p91, %p92
      %p95 = scmp.ne.s32.totalorder %s80, %s94
      %p96 = scmp.eq.s32.totalorder %s23, 0
      %p97 = por %p95, %p96
      %s99 = sadd.s32 %s98, 1
      %p102 = scmp.eq.s32.totalorder %s17, 1
      %p103 = scmp.ne.s32.totalorder %s98, %s100
      %p104 = scmp.eq.s32.totalorder %s17, 0
      %p105 = por %p103, %p104
      %p106 = scmp.ne.s32.totalorder %s98, %s100
      %p107 = scmp.eq.s32.totalorder %s22, 1
      %p108 = por %p106, %p107
      %p109 = scmp.ne.s32.totalorder %s100, %s101
      %p110 = scmp.eq.s32.totalorder %s22, 0
      %p111 = por %p109, %p110
      %p112 = scmp.ne.s32.totalorder %s100, %s101
      %p113 = scmp.eq.s32.totalorder %s23, 1
      %p114 = por %p112, %p113
      %p116 = scmp.ne.s32.totalorder %s101, %s115
      %p117 = scmp.eq.s32.totalorder %s23, 0
      %p118 = por %p116, %p117
      %s120 = sadd.s32 %s119, 1
      %p123 = scmp.eq.s32.totalorder %s17, 1
      %p124 = scmp.ne.s32.totalorder %s119, %s121
      %p125 = scmp.eq.s32.totalorder %s17, 0
      %p126 = por %p124, %p125
      %p127 = scmp.ne.s32.totalorder %s119, %s121
      %p128 = scmp.eq.s32.totalorder %s22, 1
      %p129 = por %p127, %p128
      %p130 = scmp.ne.s32.totalorder %s121, %s122
      %p131 = scmp.eq.s32.totalorder %s22, 0
      %p132 = por %p130, %p131
      %p133 = scmp.ne.s32.totalorder %s121, %s122
      %p134 = scmp.eq.s32.totalorder %s23, 1
      %p135 = por %p133, %p134
      %p137 = scmp.ne.s32.totalorder %s122, %s136
      %p138 = scmp.eq.s32.totalorder %s23, 0
      %p139 = por %p137, %p138
      %s141 = sadd.s32 %s140, 1
      %p144 = scmp.eq.s32.totalorder %s17, 1
      %p145 = scmp.ne.s32.totalorder %s140, %s142
      %p146 = scmp.eq.s32.totalorder %s17, 0
      %p147 = por %p145, %p146
      %p148 = scmp.ne.s32.totalorder %s140, %s142
      %p149 = scmp.eq.s32.totalorder %s22, 1
      %p150 = por %p148, %p149
      %p151 = scmp.ne.s32.totalorder %s142, %s143
      %p152 = scmp.eq.s32.totalorder %s22, 0
      %p153 = por %p151, %p152
      %p154 = scmp.ne.s32.totalorder %s142, %s143
      %p155 = scmp.eq.s32.totalorder %s23, 1
      %p156 = por %p154, %p155
      %p158 = scmp.ne.s32.totalorder %s143, %s157
      %p159 = scmp.eq.s32.totalorder %s23, 0
      %p160 = por %p158, %p159
      %s162 = sadd.s32 %s161, 1
      %p165 = scmp.eq.s32.totalorder %s17, 1
      %p166 = scmp.ne.s32.totalorder %s161, %s163
      %p167 = scmp.eq.s32.totalorder %s17, 0
      %p168 = por %p166, %p167
      %p169 = scmp.ne.s32.totalorder %s161, %s163
      %p170 = scmp.eq.s32.totalorder %s22, 1
      %p171 = por %p169, %p170
      %p172 = scmp.ne.s32.totalorder %s163, %s164
      %p173 = scmp.eq.s32.totalorder %s22, 0
      %p174 = por %p172, %p173
      %p175 = scmp.ne.s32.totalorder %s163, %s164
      %p176 = scmp.eq.s32.totalorder %s23, 1
      %p177 = por %p175, %p176
      %p179 = scmp.ne.s32.totalorder %s164, %s178
      %p180 = scmp.eq.s32.totalorder %s23, 0
      %p181 = por %p179, %p180
      %s183 = sadd.s32 %s182, 1
      %p186 = scmp.eq.s32.totalorder %s17, 1
      %p187 = scmp.ne.s32.totalorder %s182, %s184
      %p188 = scmp.eq.s32.totalorder %s17, 0
      %p189 = por %p187, %p188
      %p190 = scmp.ne.s32.totalorder %s182, %s184
      %p191 = scmp.eq.s32.totalorder %s22, 1
      %p192 = por %p190, %p191
      %p193 = scmp.ne.s32.totalorder %s184, %s185
      %p194 = scmp.eq.s32.totalorder %s22, 0
      %p195 = por %p193, %p194
      %p196 = scmp.ne.s32.totalorder %s184, %s185
      %p197 = scmp.eq.s32.totalorder %s23, 1
      %p198 = por %p196, %p197
      %p200 = scmp.ne.s32.totalorder %s185, %s199
      %p201 = scmp.eq.s32.totalorder %s23, 0
      %p202 = por %p200, %p201
      %s203 = ssub.s32 %s17, %s24
      %p204 = scmp.eq.s32.totalorder %s203, 0
      %s206 = sadd.s32 %s205, 1
      %s207 = scalar_select %p204, %s205, %s206
      %p210 = pneg %p204
      %p211 = scmp.eq.s32.totalorder %s17, 1
      %p212 = por %p210, %p211
      %p213 = scmp.ne.s32.totalorder %s205, %s208
      %p214 = scmp.eq.s32.totalorder %s17, 0
      %p215 = por %p213, %p214
      %p216 = scmp.ne.s32.totalorder %s205, %s208
      %p217 = scmp.eq.s32.totalorder %s22, 1
      %p218 = por %p216, %p217
      %p219 = scmp.ne.s32.totalorder %s208, %s209
      %p220 = scmp.eq.s32.totalorder %s22, 0
      %p221 = por %p219, %p220
      %p222 = scmp.ne.s32.totalorder %s208, %s209
      %p223 = scmp.eq.s32.totalorder %s23, 1
      %p224 = por %p222, %p223
      %p226 = scmp.ne.s32.totalorder %s209, %s225
      %p227 = scmp.eq.s32.totalorder %s23, 0
      %p228 = por %p226, %p227
      %p229 = scmp.le.s32.totalorder 1, %s17
      %p230 = scmp.lt.s32.totalorder %s17, 3
      %p231 = pnand %p229, %p230
      %p232 = pneg %p231
      // Predicated region
      $region9: #{tpu_custom_call.1} parent=5 // pred_check
        _
      $region10: #{tpu_custom_call.1} parent=5 // pred_check_branch
        %234 = sbr.rel (%p231) target = $region12
      $region11: #{tpu_custom_call.1} parent=5 // pred_region
        %s235 = ssub.s32 %s17, 1
        // Predicated region
        $region13: #{tpu_custom_call.1} parent=11 // pred_check
          %p236 = pneg %p90
        $region14: #{tpu_custom_call.1} parent=11 // pred_check_branch
          %238 = sbr.rel (%p236) target = $region16
        $region15: #{tpu_custom_call.1} parent=11 // pred_region
          _
        $region16: #{tpu_custom_call.1} parent=11 // pred_fallthru
          _
        // Predicated region
        $region17: #{tpu_custom_call.1} parent=11 // pred_check
          %p239 = pneg %p111
        $region18: #{tpu_custom_call.1} parent=11 // pred_check_branch
          %241 = sbr.rel (%p239) target = $region20
        $region19: #{tpu_custom_call.1} parent=11 // pred_region
          _
        $region20: #{tpu_custom_call.1} parent=11 // pred_fallthru
          _
        // Predicated region
        $region21: #{tpu_custom_call.1} parent=11 // pred_check
          %p242 = pneg %p132
        $region22: #{tpu_custom_call.1} parent=11 // pred_check_branch
          %244 = sbr.rel (%p242) target = $region24
        $region23: #{tpu_custom_call.1} parent=11 // pred_region
          _
        $region24: #{tpu_custom_call.1} parent=11 // pred_fallthru
          _
        // Predicated region
        $region25: #{tpu_custom_call.1} parent=11 // pred_check
          %p245 = pneg %p153
        $region26: #{tpu_custom_call.1} parent=11 // pred_check_branch
          %247 = sbr.rel (%p245) target = $region28
        $region27: #{tpu_custom_call.1} parent=11 // pred_region
          _
        $region28: #{tpu_custom_call.1} parent=11 // pred_fallthru
          _
        // Predicated region
        $region29: #{tpu_custom_call.1} parent=11 // pred_check
          %p248 = pneg %p174
        $region30: #{tpu_custom_call.1} parent=11 // pred_check_branch
          %250 = sbr.rel (%p248) target = $region32
        $region31: #{tpu_custom_call.1} parent=11 // pred_region
          _
        $region32: #{tpu_custom_call.1} parent=11 // pred_fallthru
          _
        // Predicated region
        $region33: #{tpu_custom_call.1} parent=11 // pred_check
          %p251 = pneg %p195
        $region34: #{tpu_custom_call.1} parent=11 // pred_check_branch
          %253 = sbr.rel (%p251) target = $region36
        $region35: #{tpu_custom_call.1} parent=11 // pred_region
          _
        $region36: #{tpu_custom_call.1} parent=11 // pred_fallthru
          _
      $region12: #{tpu_custom_call.1} parent=5 // pred_fallthru
        _
      %p254 = scmp.lt.s32.totalorder %s17, 2
      // Predicated region
      $region37: #{tpu_custom_call.1} parent=5 // pred_check
        %p255 = pneg %p254
      $region38: #{tpu_custom_call.1} parent=5 // pred_check_branch
        %257 = sbr.rel (%p255) target = $region40
      $region39: #{tpu_custom_call.1} parent=5 // pred_region
        // Predicated region
        $region41: #{tpu_custom_call.1} parent=39 // pred_check
          %p258 = pneg %p37
        $region42: #{tpu_custom_call.1} parent=39 // pred_check_branch
          %260 = sbr.rel (%p258) target = $region44
        $region43: #{tpu_custom_call.1} parent=39 // pred_region
          %s261 = smul.u32 32, %s17
          %p262 = scmp.lt.s32.totalorder %s261, 63
          %s263 = scalar_select %p262, %s261, 63
          %s264 = smul.addr %s263, 8
          %s265 = scalar_lea.vmem %s0, %s264
          %s266 = smul.u32 32, %s17
        $region44: #{tpu_custom_call.1} parent=39 // pred_fallthru
          _
        // Predicated region
        $region45: #{tpu_custom_call.1} parent=39 // pred_check
          %p267 = pneg %p63
        $region46: #{tpu_custom_call.1} parent=39 // pred_check_branch
          %269 = sbr.rel (%p267) target = $region48
        $region47: #{tpu_custom_call.1} parent=39 // pred_region
          %s270 = smul.u32 32, %s17
          %p271 = scmp.lt.s32.totalorder %s270, 63
          %s272 = scalar_select %p271, %s270, 63
          %s273 = smul.addr %s272, 8
          %s274 = scalar_lea.vmem %s1, %s273
          %s275 = smul.u32 32, %s17
        $region48: #{tpu_custom_call.1} parent=39 // pred_fallthru
          _
      $region40: #{tpu_custom_call.1} parent=5 // pred_fallthru
        _
      %p276 = scmp.le.s32.totalorder 1, %s17
      %p277 = scmp.lt.s32.totalorder %s17, 3
      %p278 = pnand %p276, %p277
      %p279 = pneg %p278
      // Predicated region
      $region49: #{tpu_custom_call.1} parent=5 // pred_check
        _
      $region50: #{tpu_custom_call.1} parent=5 // pred_check_branch
        %281 = sbr.rel (%p278) target = $region52
      $region51: #{tpu_custom_call.1} parent=5 // pred_region
        %s282 = ssub.s32 %s17, 1
        %s283 = smul.u32 32, %s22
        %p284 = scmp.lt.s32.totalorder %s283, 63
        %s285 = scalar_select %p284, %s283, 63
        %s286 = smul.addr %s285, 8
        %s287 = scalar_lea.vmem %s0, %s286
        %p288 = pneg %p43
        %p289 = pneg %p40
        %s290 = smul.u32 32, %s22
        %p291 = scmp.lt.s32.totalorder %s290, 63
        %s292 = scalar_select %p291, %s290, 63
        %s293 = smul.addr %s292, 8
        %s294 = scalar_lea.vmem %s1, %s293
        %p295 = pneg %p69
        %p296 = pneg %p66
        %p297 = pneg %p90
        %p298 = pneg %p87
        %p299 = pneg %p111
        %p300 = pneg %p108
        %p301 = pneg %p132
        %p302 = pneg %p129
        %p303 = pneg %p153
        %p304 = pneg %p150
        %p305 = pneg %p174
        %p306 = pneg %p171
        %p307 = pneg %p195
        %p308 = pneg %p192
        %p309 = pneg %p221
        %p310 = pneg %p218
        %s311 = sand.u32 %s208, 1
        %s312 = scalar_lea.sflag [#allocation3], %s311
        %s313 = sand.u32 %s208, 1
        %s314 = smul.addr %s313, 2
        %s315 = scalar_lea.vmem [#allocation2], %s314
        %s316 = smul.u32 32, %s22
        %p317 = scmp.lt.s32.totalorder %s316, 63
        %s318 = scalar_select %p317, %s316, 63
        %s319 = smul.addr %s318, 8
        %s320 = scalar_lea.vmem %s0, %s319
        %s321 = smul.u32 32, %s22
        %s322 = smul.u32 32, %s22
        %p323 = scmp.lt.s32.totalorder %s322, 63
        %s324 = scalar_select %p323, %s322, 63
        %s325 = smul.addr %s324, 8
        %s326 = scalar_lea.vmem %s1, %s325
        %s327 = smul.u32 32, %s22
        %s328 = smul.u32 2, %s22
        %v329 = vld [vmem:[%s320] sm:$0xff]
        %v330 = vld [vmem:[%s320 + $0x8] sm:$0xff]
        %v331 = vld [vmem:[%s320 + $0x10] sm:$0xff]
        %v332 = vld [vmem:[%s320 + $0x18] sm:$0xff]
        %v333 = vld [vmem:[%s320 + $0x20] sm:$0xff]
        %v334 = vld [vmem:[%s320 + $0x28] sm:$0xff]
        %v335 = vld [vmem:[%s320 + $0x30] sm:$0xff]
        %v336 = vld [vmem:[%s320 + $0x38] sm:$0xff]
        %v337 = vld [vmem:[%s320 + $0x40] sm:$0xff]
        %v338 = vld [vmem:[%s320 + $0x48] sm:$0xff]
        %v339 = vld [vmem:[%s320 + $0x50] sm:$0xff]
        %v340 = vld [vmem:[%s320 + $0x58] sm:$0xff]
        %v341 = vld [vmem:[%s320 + $0x60] sm:$0xff]
        %v342 = vld [vmem:[%s320 + $0x68] sm:$0xff]
        %v343 = vld [vmem:[%s320 + $0x70] sm:$0xff]
        %v344 = vld [vmem:[%s320 + $0x78] sm:$0xff]
        %v345 = vld [vmem:[%s320 + $0x80] sm:$0xff]
        %v346 = vld [vmem:[%s320 + $0x88] sm:$0xff]
        %v347 = vld [vmem:[%s320 + $0x90] sm:$0xff]
        %v348 = vld [vmem:[%s320 + $0x98] sm:$0xff]
        %v349 = vld [vmem:[%s320 + $0xa0] sm:$0xff]
        %v350 = vld [vmem:[%s320 + $0xa8] sm:$0xff]
        %v351 = vld [vmem:[%s320 + $0xb0] sm:$0xff]
        %v352 = vld [vmem:[%s320 + $0xb8] sm:$0xff]
        %v353 = vld [vmem:[%s320 + $0xc0] sm:$0xff]
        %v354 = vld [vmem:[%s320 + $0xc8] sm:$0xff]
        %v355 = vld [vmem:[%s320 + $0xd0] sm:$0xff]
        %v356 = vld [vmem:[%s320 + $0xd8] sm:$0xff]
        %v357 = vld [vmem:[%s320 + $0xe0] sm:$0xff]
        %v358 = vld [vmem:[%s320 + $0xe8] sm:$0xff]
        %v359 = vld [vmem:[%s320 + $0xf0] sm:$0xff]
        %v360 = vld [vmem:[%s320 + $0xf8] sm:$0xff]
        %v361 = vld [vmem:[%s2] sm:$0xff]
        %v362 = vld [vmem:[%s2 + $0x8] sm:$0x3]
        %v363 = vld [vmem:[%s3] sm:$0x1]
        %v365 = vlaneseq
        %v366 = vshrl.u32 %v365, 7
        %v367 = vsub.s32 0, %v366
        %v368 = vrot.slane %v363, %v367
        %vm370 = vcmask 80896
        %v372 = vsel %vm370, %v329, 0
        %v375 = vsel %vm370, %v330, 0
        %v378 = vsel %vm370, %v331, 0
        %v381 = vsel %vm370, %v332, 0
        %v384 = vsel %vm370, %v333, 0
        %v387 = vsel %vm370, %v334, 0
        %v390 = vsel %vm370, %v335, 0
        %v393 = vsel %vm370, %v336, 0
        %v396 = vsel %vm370, %v337, 0
        %v399 = vsel %vm370, %v338, 0
        %v402 = vsel %vm370, %v339, 0
        %v405 = vsel %vm370, %v340, 0
        %v408 = vsel %vm370, %v341, 0
        %v411 = vsel %vm370, %v342, 0
        %v414 = vsel %vm370, %v343, 0
        %v417 = vsel %vm370, %v344, 0
        %v420 = vsel %vm370, %v345, 0
        %v423 = vsel %vm370, %v346, 0
        %v426 = vsel %vm370, %v347, 0
        %v429 = vsel %vm370, %v348, 0
        %v432 = vsel %vm370, %v349, 0
        %v435 = vsel %vm370, %v350, 0
        %v438 = vsel %vm370, %v351, 0
        %v441 = vsel %vm370, %v352, 0
        %v444 = vsel %vm370, %v353, 0
        %v447 = vsel %vm370, %v354, 0
        %v450 = vsel %vm370, %v355, 0
        %v453 = vsel %vm370, %v356, 0
        %v456 = vsel %vm370, %v357, 0
        %v459 = vsel %vm370, %v358, 0
        %v462 = vsel %vm370, %v359, 0
        %v465 = vsel %vm370, %v360, 0
        %vm467 = vcmask 1041408
        %v469 = vsel %vm467, %v362, 0
        %471 = vmatprep.subr.mxu0 0.0
        %472 = vmatpush1.msra.mxu0 %v361
        %473 = vmatprep.subr.mxu0 0.0
        %474 = vmatpush1.msra.mxu0 %v469
        %475 = vmatprep.subr.mxu0 0.0
        %476 = vmatpush1.msra.mxu0 0.0
        %477 = vmatprep.subr.mxu0 0.0
        %478 = vmatpush1.msra.mxu0 0.0
        %479 = vmatprep.subr.mxu0 0.0
        %480 = vmatpush1.msra.mxu0 0.0
        %481 = vmatprep.subr.mxu0 0.0
        %482 = vmatpush1.msra.mxu0 0.0
        %483 = vmatprep.subr.mxu0 0.0
        %484 = vmatpush1.msra.mxu0 0.0
        %485 = vmatprep.subr.mxu0 0.0
        %486 = vmatpush1.msra.mxu0 0.0
        %487 = vmatprep.subr.mxu0 0.0
        %488 = vmatpush1.msra.mxu0 0.0
        %489 = vmatprep.subr.mxu0 0.0
        %490 = vmatpush1.msra.mxu0 0.0
        %491 = vmatprep.subr.mxu0 0.0
        %492 = vmatpush1.msra.mxu0 0.0
        %493 = vmatprep.subr.mxu0 0.0
        %494 = vmatpush1.msra.mxu0 0.0
        %495 = vmatprep.subr.mxu0 0.0
        %496 = vmatpush1.msra.mxu0 0.0
        %497 = vmatprep.subr.mxu0 0.0
        %498 = vmatpush1.msra.mxu0 0.0
        %499 = vmatprep.subr.mxu0 0.0
        %500 = vmatpush1.msra.mxu0 0.0
        %501 = vmatprep.subr.mxu0 0.0
        %502 = vmatpush1.msra.mxu0 0.0
        %503 = vmatprep.subr.mxu0 0.0
        %504 = vmatpush1.msra.mxu0 0.0
        %505 = vmatprep.subr.mxu0 0.0
        %506 = vmatpush1.msra.mxu0 0.0
        %507 = vmatprep.subr.mxu0 0.0
        %508 = vmatpush1.msra.mxu0 0.0
        %509 = vmatprep.subr.mxu0 0.0
        %510 = vmatpush1.msra.mxu0 0.0
        %511 = vmatprep.subr.mxu0 0.0
        %512 = vmatpush1.msra.mxu0 0.0
        %513 = vmatprep.subr.mxu0 0.0
        %514 = vmatpush1.msra.mxu0 0.0
        %515 = vmatprep.subr.mxu0 0.0
        %516 = vmatpush1.msra.mxu0 0.0
        %517 = vmatprep.subr.mxu0 0.0
        %518 = vmatpush1.msra.mxu0 0.0
        %519 = vmatprep.subr.mxu0 0.0
        %520 = vmatpush1.msra.mxu0 0.0
        %521 = vmatprep.subr.mxu0 0.0
        %522 = vmatpush1.msra.mxu0 0.0
        %523 = vmatprep.subr.mxu0 0.0
        %524 = vmatpush1.msra.mxu0 0.0
        %525 = vmatprep.subr.mxu0 0.0
        %526 = vmatpush1.msra.mxu0 0.0
        %527 = vmatprep.subr.mxu0 0.0
        %528 = vmatpush1.msra.mxu0 0.0
        %529 = vmatprep.subr.mxu0 0.0
        %530 = vmatpush1.msra.mxu0 0.0
        %531 = vmatprep.subr.mxu0 0.0
        %532 = vmatpush1.msra.mxu0 0.0
        %533 = vmatprep.subr.mxu0 0.0
        %534 = vmatpush1.msra.mxu0 0.0
        %535 = vmatprep.mubr.f32.mxu0 0.0
        %536 = vmatmul.mubr.f32.gmra.mrb[0].mxu0 %v372
        %v537 = vpop.f32.mrb[0].mxu0
        %v538 = vadd.f32 %v368, %v537
        %v539 = vpop.f32.mrb[0].mxu0
        %540 = vmatprep.mubr.f32.mxu0 0.0
        %541 = vmatmul.mubr.f32.gmra.mrb[0].mxu0 %v375
        %v542 = vpop.f32.mrb[0].mxu0
        %v543 = vadd.f32 %v368, %v542
        %v544 = vpop.f32.mrb[0].mxu0
        %545 = vmatprep.mubr.f32.mxu0 0.0
        %546 = vmatmul.mubr.f32.gmra.mrb[0].mxu0 %v378
        %v547 = vpop.f32.mrb[0].mxu0
        %v548 = vadd.f32 %v368, %v547
        %v549 = vpop.f32.mrb[0].mxu0
        %550 = vmatprep.mubr.f32.mxu0 0.0
        %551 = vmatmul.mubr.f32.gmra.mrb[0].mxu0 %v381
        %v552 = vpop.f32.mrb[0].mxu0
        %v553 = vadd.f32 %v368, %v552
        %v554 = vpop.f32.mrb[0].mxu0
        %555 = vmatprep.mubr.f32.mxu0 0.0
        %556 = vmatmul.mubr.f32.gmra.mrb[0].mxu0 %v384
        %v557 = vpop.f32.mrb[0].mxu0
        %v558 = vadd.f32 %v368, %v557
        %v559 = vpop.f32.mrb[0].mxu0
        %560 = vmatprep.mubr.f32.mxu0 0.0
        %561 = vmatmul.mubr.f32.gmra.mrb[0].mxu0 %v387
        %v562 = vpop.f32.mrb[0].mxu0
        %v563 = vadd.f32 %v368, %v562
        %v564 = vpop.f32.mrb[0].mxu0
        %565 = vmatprep.mubr.f32.mxu0 0.0
        %566 = vmatmul.mubr.f32.gmra.mrb[0].mxu0 %v390
        %v567 = vpop.f32.mrb[0].mxu0
        %v568 = vadd.f32 %v368, %v567
        %v569 = vpop.f32.mrb[0].mxu0
        %570 = vmatprep.mubr.f32.mxu0 0.0
        %571 = vmatmul.mubr.f32.gmra.mrb[0].mxu0 %v393
        %v572 = vpop.f32.mrb[0].mxu0
        %v573 = vadd.f32 %v368, %v572
        %v574 = vpop.f32.mrb[0].mxu0
        %575 = vmatprep.mubr.f32.mxu0 0.0
        %576 = vmatmul.mubr.f32.gmra.mrb[0].mxu0 %v396
        %v577 = vpop.f32.mrb[0].mxu0
        %v578 = vadd.f32 %v368, %v577
        %v579 = vpop.f32.mrb[0].mxu0
        %580 = vmatprep.mubr.f32.mxu0 0.0
        %581 = vmatmul.mubr.f32.gmra.mrb[0].mxu0 %v399
        %v582 = vpop.f32.mrb[0].mxu0
        %v583 = vadd.f32 %v368, %v582
        %v584 = vpop.f32.mrb[0].mxu0
        %585 = vmatprep.mubr.f32.mxu0 0.0
        %586 = vmatmul.mubr.f32.gmra.mrb[0].mxu0 %v402
        %v587 = vpop.f32.mrb[0].mxu0
        %v588 = vadd.f32 %v368, %v587
        %v589 = vpop.f32.mrb[0].mxu0
        %590 = vmatprep.mubr.f32.mxu0 0.0
        %591 = vmatmul.mubr.f32.gmra.mrb[0].mxu0 %v405
        %v592 = vpop.f32.mrb[0].mxu0
        %v593 = vadd.f32 %v368, %v592
        %v594 = vpop.f32.mrb[0].mxu0
        %595 = vmatprep.mubr.f32.mxu0 0.0
        %596 = vmatmul.mubr.f32.gmra.mrb[0].mxu0 %v408
        %v597 = vpop.f32.mrb[0].mxu0
        %v598 = vadd.f32 %v368, %v597
        %v599 = vpop.f32.mrb[0].mxu0
        %600 = vmatprep.mubr.f32.mxu0 0.0
        %601 = vmatmul.mubr.f32.gmra.mrb[0].mxu0 %v411
        %v602 = vpop.f32.mrb[0].mxu0
        %v603 = vadd.f32 %v368, %v602
        %v604 = vpop.f32.mrb[0].mxu0
        %605 = vmatprep.mubr.f32.mxu0 0.0
        %606 = vmatmul.mubr.f32.gmra.mrb[0].mxu0 %v414
        %v607 = vpop.f32.mrb[0].mxu0
        %v608 = vadd.f32 %v368, %v607
        %v609 = vpop.f32.mrb[0].mxu0
        %610 = vmatprep.mubr.f32.mxu0 0.0
        %611 = vmatmul.mubr.f32.gmra.mrb[0].mxu0 %v417
        %v612 = vpop.f32.mrb[0].mxu0
        %v613 = vadd.f32 %v368, %v612
        %v614 = vpop.f32.mrb[0].mxu0
        %615 = vmatprep.mubr.f32.mxu0 0.0
        %616 = vmatmul.mubr.f32.gmra.mrb[0].mxu0 %v420
        %v617 = vpop.f32.mrb[0].mxu0
        %v618 = vadd.f32 %v368, %v617
        %v619 = vpop.f32.mrb[0].mxu0
        %620 = vmatprep.mubr.f32.mxu0 0.0
        %621 = vmatmul.mubr.f32.gmra.mrb[0].mxu0 %v423
        %v622 = vpop.f32.mrb[0].mxu0
        %v623 = vadd.f32 %v368, %v622
        %v624 = vpop.f32.mrb[0].mxu0
        %625 = vmatprep.mubr.f32.mxu0 0.0
        %626 = vmatmul.mubr.f32.gmra.mrb[0].mxu0 %v426
        %v627 = vpop.f32.mrb[0].mxu0
        %v628 = vadd.f32 %v368, %v627
        %v629 = vpop.f32.mrb[0].mxu0
        %630 = vmatprep.mubr.f32.mxu0 0.0
        %631 = vmatmul.mubr.f32.gmra.mrb[0].mxu0 %v429
        %v632 = vpop.f32.mrb[0].mxu0
        %v633 = vadd.f32 %v368, %v632
        %v634 = vpop.f32.mrb[0].mxu0
        %635 = vmatprep.mubr.f32.mxu0 0.0
        %636 = vmatmul.mubr.f32.gmra.mrb[0].mxu0 %v432
        %v637 = vpop.f32.mrb[0].mxu0
        %v638 = vadd.f32 %v368, %v637
        %v639 = vpop.f32.mrb[0].mxu0
        %640 = vmatprep.mubr.f32.mxu0 0.0
        %641 = vmatmul.mubr.f32.gmra.mrb[0].mxu0 %v435
        %v642 = vpop.f32.mrb[0].mxu0
        %v643 = vadd.f32 %v368, %v642
        %v644 = vpop.f32.mrb[0].mxu0
        %645 = vmatprep.mubr.f32.mxu0 0.0
        %646 = vmatmul.mubr.f32.gmra.mrb[0].mxu0 %v438
        %v647 = vpop.f32.mrb[0].mxu0
        %v648 = vadd.f32 %v368, %v647
        %v649 = vpop.f32.mrb[0].mxu0
        %650 = vmatprep.mubr.f32.mxu0 0.0
        %651 = vmatmul.mubr.f32.gmra.mrb[0].mxu0 %v441
        %v652 = vpop.f32.mrb[0].mxu0
        %v653 = vadd.f32 %v368, %v652
        %v654 = vpop.f32.mrb[0].mxu0
        %655 = vmatprep.mubr.f32.mxu0 0.0
        %656 = vmatmul.mubr.f32.gmra.mrb[0].mxu0 %v444
        %v657 = vpop.f32.mrb[0].mxu0
        %v658 = vadd.f32 %v368, %v657
        %v659 = vpop.f32.mrb[0].mxu0
        %660 = vmatprep.mubr.f32.mxu0 0.0
        %661 = vmatmul.mubr.f32.gmra.mrb[0].mxu0 %v447
        %v662 = vpop.f32.mrb[0].mxu0
        %v663 = vadd.f32 %v368, %v662
        %v664 = vpop.f32.mrb[0].mxu0
        %665 = vmatprep.mubr.f32.mxu0 0.0
        %666 = vmatmul.mubr.f32.gmra.mrb[0].mxu0 %v450
        %v667 = vpop.f32.mrb[0].mxu0
        %v668 = vadd.f32 %v368, %v667
        %v669 = vpop.f32.mrb[0].mxu0
        %670 = vmatprep.mubr.f32.mxu0 0.0
        %671 = vmatmul.mubr.f32.gmra.mrb[0].mxu0 %v453
        %v672 = vpop.f32.mrb[0].mxu0
        %v673 = vadd.f32 %v368, %v672
        %v674 = vpop.f32.mrb[0].mxu0
        %675 = vmatprep.mubr.f32.mxu0 0.0
        %676 = vmatmul.mubr.f32.gmra.mrb[0].mxu0 %v456
        %v677 = vpop.f32.mrb[0].mxu0
        %v678 = vadd.f32 %v368, %v677
        %v679 = vpop.f32.mrb[0].mxu0
        %680 = vmatprep.mubr.f32.mxu0 0.0
        %681 = vmatmul.mubr.f32.gmra.mrb[0].mxu0 %v459
        %v682 = vpop.f32.mrb[0].mxu0
        %v683 = vadd.f32 %v368, %v682
        %v684 = vpop.f32.mrb[0].mxu0
        %685 = vmatprep.mubr.f32.mxu0 0.0
        %686 = vmatmul.mubr.f32.gmra.mrb[0].mxu0 %v462
        %v687 = vpop.f32.mrb[0].mxu0
        %v688 = vadd.f32 %v368, %v687
        %v689 = vpop.f32.mrb[0].mxu0
        %690 = vmatprep.mubr.f32.mxu0 0.0
        %691 = vmatmul.mubr.f32.gmra.mrb[0].mxu0 %v465
        %v692 = vpop.f32.mrb[0].mxu0
        %v693 = vadd.f32 %v368, %v692
        %v694 = vpop.f32.mrb[0].mxu0
        %695 = vdwg.mxu0
        %v696 = vmax.f32 %v538, 0.0
        %v697 = vmax.f32 %v543, 0.0
        %v698 = vmax.f32 %v548, 0.0
        %v699 = vmax.f32 %v553, 0.0
        %v700 = vmax.f32 %v558, 0.0
        %v701 = vmax.f32 %v563, 0.0
        %v702 = vmax.f32 %v568, 0.0
        %v703 = vmax.f32 %v573, 0.0
        %v704 = vmax.f32 %v578, 0.0
        %v705 = vmax.f32 %v583, 0.0
        %v706 = vmax.f32 %v588, 0.0
        %v707 = vmax.f32 %v593, 0.0
        %v708 = vmax.f32 %v598, 0.0
        %v709 = vmax.f32 %v603, 0.0
        %v710 = vmax.f32 %v608, 0.0
        %v711 = vmax.f32 %v613, 0.0
        %v712 = vmax.f32 %v618, 0.0
        %v713 = vmax.f32 %v623, 0.0
        %v714 = vmax.f32 %v628, 0.0
        %v715 = vmax.f32 %v633, 0.0
        %v716 = vmax.f32 %v638, 0.0
        %v717 = vmax.f32 %v643, 0.0
        %v718 = vmax.f32 %v648, 0.0
        %v719 = vmax.f32 %v653, 0.0
        %v720 = vmax.f32 %v658, 0.0
        %v721 = vmax.f32 %v663, 0.0
        %v722 = vmax.f32 %v668, 0.0
        %v723 = vmax.f32 %v673, 0.0
        %v724 = vmax.f32 %v678, 0.0
        %v725 = vmax.f32 %v683, 0.0
        %v726 = vmax.f32 %v688, 0.0
        %v727 = vmax.f32 %v693, 0.0
        %v728 = vld [vmem:[%s4] sm:$0xff]
        %v729 = vld [vmem:[%s4 + $0x8] sm:$0xff]
        %v730 = vld [vmem:[%s4 + $0x10] sm:$0xff]
        %v731 = vld [vmem:[%s4 + $0x18] sm:$0xff]
        %v732 = vld [vmem:[%s4 + $0x20] sm:$0xff]
        %v733 = vld [vmem:[%s4 + $0x28] sm:$0xff]
        %v734 = vld [vmem:[%s4 + $0x30] sm:$0xff]
        %v735 = vld [vmem:[%s4 + $0x38] sm:$0xff]
        %v736 = vld [vmem:[%s4 + $0x40] sm:$0xff]
        %v737 = vld [vmem:[%s4 + $0x48] sm:$0xff]
        %v738 = vld [vmem:[%s4 + $0x50] sm:$0xff]
        %v739 = vld [vmem:[%s4 + $0x58] sm:$0xff]
        %v740 = vld [vmem:[%s4 + $0x60] sm:$0xff]
        %v741 = vld [vmem:[%s4 + $0x68] sm:$0xff]
        %v742 = vld [vmem:[%s4 + $0x70] sm:$0xff]
        %v743 = vld [vmem:[%s4 + $0x78] sm:$0xff]
        %v744 = vld [vmem:[%s5] sm:$0x1]
        %v746 = vlaneseq
        %v747 = vshrl.u32 %v746, 7
        %v748 = vsub.s32 0, %v747
        %v749 = vrot.slane %v744, %v748
        %751 = vmatprep.subr.mxu0 0.0
        %752 = vmatpush1.msra.mxu0 %v728
        %753 = vmatprep.subr.mxu0 0.0
        %754 = vmatpush1.msra.mxu0 %v729
        %755 = vmatprep.subr.mxu0 0.0
        %756 = vmatpush1.msra.mxu0 %v730
        %757 = vmatprep.subr.mxu0 0.0
        %758 = vmatpush1.msra.mxu0 %v731
        %759 = vmatprep.subr.mxu0 0.0
        %760 = vmatpush1.msra.mxu0 %v732
        %761 = vmatprep.subr.mxu0 0.0
        %762 = vmatpush1.msra.mxu0 %v733
        %763 = vmatprep.subr.mxu0 0.0
        %764 = vmatpush1.msra.mxu0 %v734
        %765 = vmatprep.subr.mxu0 0.0
        %766 = vmatpush1.msra.mxu0 %v735
        %767 = vmatprep.subr.mxu0 0.0
        %768 = vmatpush1.msra.mxu0 %v736
        %769 = vmatprep.subr.mxu0 0.0
        %770 = vmatpush1.msra.mxu0 %v737
        %771 = vmatprep.subr.mxu0 0.0
        %772 = vmatpush1.msra.mxu0 %v738
        %773 = vmatprep.subr.mxu0 0.0
        %774 = vmatpush1.msra.mxu0 %v739
        %775 = vmatprep.subr.mxu0 0.0
        %776 = vmatpush1.msra.mxu0 %v740
        %777 = vmatprep.subr.mxu0 0.0
        %778 = vmatpush1.msra.mxu0 %v741
        %779 = vmatprep.subr.mxu0 0.0
        %780 = vmatpush1.msra.mxu0 %v742
        %781 = vmatprep.subr.mxu0 0.0
        %782 = vmatpush1.msra.mxu0 %v743
        %783 = vmatprep.subr.mxu0 0.0
        %784 = vmatpush1.msra.mxu0 0.0
        %785 = vmatprep.subr.mxu0 0.0
        %786 = vmatpush1.msra.mxu0 0.0
        %787 = vmatprep.subr.mxu0 0.0
        %788 = vmatpush1.msra.mxu0 0.0
        %789 = vmatprep.subr.mxu0 0.0
        %790 = vmatpush1.msra.mxu0 0.0
        %791 = vmatprep.subr.mxu0 0.0
        %792 = vmatpush1.msra.mxu0 0.0
        %793 = vmatprep.subr.mxu0 0.0
        %794 = vmatpush1.msra.mxu0 0.0
        %795 = vmatprep.subr.mxu0 0.0
        %796 = vmatpush1.msra.mxu0 0.0
        %797 = vmatprep.subr.mxu0 0.0
        %798 = vmatpush1.msra.mxu0 0.0
        %799 = vmatprep.subr.mxu0 0.0
        %800 = vmatpush1.msra.mxu0 0.0
        %801 = vmatprep.subr.mxu0 0.0
        %802 = vmatpush1.msra.mxu0 0.0
        %803 = vmatprep.subr.mxu0 0.0
        %804 = vmatpush1.msra.mxu0 0.0
        %805 = vmatprep.subr.mxu0 0.0
        %806 = vmatpush1.msra.mxu0 0.0
        %807 = vmatprep.subr.mxu0 0.0
        %808 = vmatpush1.msra.mxu0 0.0
        %809 = vmatprep.subr.mxu0 0.0
        %810 = vmatpush1.msra.mxu0 0.0
        %811 = vmatprep.subr.mxu0 0.0
        %812 = vmatpush1.msra.mxu0 0.0
        %813 = vmatprep.subr.mxu0 0.0
        %814 = vmatpush1.msra.mxu0 0.0
        %815 = vmatprep.mubr.f32.mxu0 0.0
        %816 = vmatmul.mubr.f32.gmra.mrb[0].mxu0 %v696
        %v817 = vpop.f32.mrb[0].mxu0
        %v818 = vadd.f32 %v749, %v817
        %v819 = vpop.f32.mrb[0].mxu0
        %820 = vmatprep.mubr.f32.mxu0 0.0
        %821 = vmatmul.mubr.f32.gmra.mrb[0].mxu0 %v697
        %v822 = vpop.f32.mrb[0].mxu0
        %v823 = vadd.f32 %v749, %v822
        %v824 = vpop.f32.mrb[0].mxu0
        %825 = vmatprep.mubr.f32.mxu0 0.0
        %826 = vmatmul.mubr.f32.gmra.mrb[0].mxu0 %v698
        %v827 = vpop.f32.mrb[0].mxu0
        %v828 = vadd.f32 %v749, %v827
        %v829 = vpop.f32.mrb[0].mxu0
        %830 = vmatprep.mubr.f32.mxu0 0.0
        %831 = vmatmul.mubr.f32.gmra.mrb[0].mxu0 %v699
        %v832 = vpop.f32.mrb[0].mxu0
        %v833 = vadd.f32 %v749, %v832
        %v834 = vpop.f32.mrb[0].mxu0
        %835 = vmatprep.mubr.f32.mxu0 0.0
        %836 = vmatmul.mubr.f32.gmra.mrb[0].mxu0 %v700
        %v837 = vpop.f32.mrb[0].mxu0
        %v838 = vadd.f32 %v749, %v837
        %v839 = vpop.f32.mrb[0].mxu0
        %840 = vmatprep.mubr.f32.mxu0 0.0
        %841 = vmatmul.mubr.f32.gmra.mrb[0].mxu0 %v701
        %v842 = vpop.f32.mrb[0].mxu0
        %v843 = vadd.f32 %v749, %v842
        %v844 = vpop.f32.mrb[0].mxu0
        %845 = vmatprep.mubr.f32.mxu0 0.0
        %846 = vmatmul.mubr.f32.gmra.mrb[0].mxu0 %v702
        %v847 = vpop.f32.mrb[0].mxu0
        %v848 = vadd.f32 %v749, %v847
        %v849 = vpop.f32.mrb[0].mxu0
        %850 = vmatprep.mubr.f32.mxu0 0.0
        %851 = vmatmul.mubr.f32.gmra.mrb[0].mxu0 %v703
        %v852 = vpop.f32.mrb[0].mxu0
        %v853 = vadd.f32 %v749, %v852
        %v854 = vpop.f32.mrb[0].mxu0
        %855 = vmatprep.mubr.f32.mxu0 0.0
        %856 = vmatmul.mubr.f32.gmra.mrb[0].mxu0 %v704
        %v857 = vpop.f32.mrb[0].mxu0
        %v858 = vadd.f32 %v749, %v857
        %v859 = vpop.f32.mrb[0].mxu0
        %860 = vmatprep.mubr.f32.mxu0 0.0
        %861 = vmatmul.mubr.f32.gmra.mrb[0].mxu0 %v705
        %v862 = vpop.f32.mrb[0].mxu0
        %v863 = vadd.f32 %v749, %v862
        %v864 = vpop.f32.mrb[0].mxu0
        %865 = vmatprep.mubr.f32.mxu0 0.0
        %866 = vmatmul.mubr.f32.gmra.mrb[0].mxu0 %v706
        %v867 = vpop.f32.mrb[0].mxu0
        %v868 = vadd.f32 %v749, %v867
        %v869 = vpop.f32.mrb[0].mxu0
        %870 = vmatprep.mubr.f32.mxu0 0.0
        %871 = vmatmul.mubr.f32.gmra.mrb[0].mxu0 %v707
        %v872 = vpop.f32.mrb[0].mxu0
        %v873 = vadd.f32 %v749, %v872
        %v874 = vpop.f32.mrb[0].mxu0
        %875 = vmatprep.mubr.f32.mxu0 0.0
        %876 = vmatmul.mubr.f32.gmra.mrb[0].mxu0 %v708
        %v877 = vpop.f32.mrb[0].mxu0
        %v878 = vadd.f32 %v749, %v877
        %v879 = vpop.f32.mrb[0].mxu0
        %880 = vmatprep.mubr.f32.mxu0 0.0
        %881 = vmatmul.mubr.f32.gmra.mrb[0].mxu0 %v709
        %v882 = vpop.f32.mrb[0].mxu0
        %v883 = vadd.f32 %v749, %v882
        %v884 = vpop.f32.mrb[0].mxu0
        %885 = vmatprep.mubr.f32.mxu0 0.0
        %886 = vmatmul.mubr.f32.gmra.mrb[0].mxu0 %v710
        %v887 = vpop.f32.mrb[0].mxu0
        %v888 = vadd.f32 %v749, %v887
        %v889 = vpop.f32.mrb[0].mxu0
        %890 = vmatprep.mubr.f32.mxu0 0.0
        %891 = vmatmul.mubr.f32.gmra.mrb[0].mxu0 %v711
        %v892 = vpop.f32.mrb[0].mxu0
        %v893 = vadd.f32 %v749, %v892
        %v894 = vpop.f32.mrb[0].mxu0
        %895 = vmatprep.mubr.f32.mxu0 0.0
        %896 = vmatmul.mubr.f32.gmra.mrb[0].mxu0 %v712
        %v897 = vpop.f32.mrb[0].mxu0
        %v898 = vadd.f32 %v749, %v897
        %v899 = vpop.f32.mrb[0].mxu0
        %900 = vmatprep.mubr.f32.mxu0 0.0
        %901 = vmatmul.mubr.f32.gmra.mrb[0].mxu0 %v713
        %v902 = vpop.f32.mrb[0].mxu0
        %v903 = vadd.f32 %v749, %v902
        %v904 = vpop.f32.mrb[0].mxu0
        %905 = vmatprep.mubr.f32.mxu0 0.0
        %906 = vmatmul.mubr.f32.gmra.mrb[0].mxu0 %v714
        %v907 = vpop.f32.mrb[0].mxu0
        %v908 = vadd.f32 %v749, %v907
        %v909 = vpop.f32.mrb[0].mxu0
        %910 = vmatprep.mubr.f32.mxu0 0.0
        %911 = vmatmul.mubr.f32.gmra.mrb[0].mxu0 %v715
        %v912 = vpop.f32.mrb[0].mxu0
        %v913 = vadd.f32 %v749, %v912
        %v914 = vpop.f32.mrb[0].mxu0
        %915 = vmatprep.mubr.f32.mxu0 0.0
        %916 = vmatmul.mubr.f32.gmra.mrb[0].mxu0 %v716
        %v917 = vpop.f32.mrb[0].mxu0
        %v918 = vadd.f32 %v749, %v917
        %v919 = vpop.f32.mrb[0].mxu0
        %920 = vmatprep.mubr.f32.mxu0 0.0
        %921 = vmatmul.mubr.f32.gmra.mrb[0].mxu0 %v717
        %v922 = vpop.f32.mrb[0].mxu0
        %v923 = vadd.f32 %v749, %v922
        %v924 = vpop.f32.mrb[0].mxu0
        %925 = vmatprep.mubr.f32.mxu0 0.0
        %926 = vmatmul.mubr.f32.gmra.mrb[0].mxu0 %v718
        %v927 = vpop.f32.mrb[0].mxu0
        %v928 = vadd.f32 %v749, %v927
        %v929 = vpop.f32.mrb[0].mxu0
        %930 = vmatprep.mubr.f32.mxu0 0.0
        %931 = vmatmul.mubr.f32.gmra.mrb[0].mxu0 %v719
        %v932 = vpop.f32.mrb[0].mxu0
        %v933 = vadd.f32 %v749, %v932
        %v934 = vpop.f32.mrb[0].mxu0
        %935 = vmatprep.mubr.f32.mxu0 0.0
        %936 = vmatmul.mubr.f32.gmra.mrb[0].mxu0 %v720
        %v937 = vpop.f32.mrb[0].mxu0
        %v938 = vadd.f32 %v749, %v937
        %v939 = vpop.f32.mrb[0].mxu0
        %940 = vmatprep.mubr.f32.mxu0 0.0
        %941 = vmatmul.mubr.f32.gmra.mrb[0].mxu0 %v721
        %v942 = vpop.f32.mrb[0].mxu0
        %v943 = vadd.f32 %v749, %v942
        %v944 = vpop.f32.mrb[0].mxu0
        %945 = vmatprep.mubr.f32.mxu0 0.0
        %946 = vmatmul.mubr.f32.gmra.mrb[0].mxu0 %v722
        %v947 = vpop.f32.mrb[0].mxu0
        %v948 = vadd.f32 %v749, %v947
        %v949 = vpop.f32.mrb[0].mxu0
        %950 = vmatprep.mubr.f32.mxu0 0.0
        %951 = vmatmul.mubr.f32.gmra.mrb[0].mxu0 %v723
        %v952 = vpop.f32.mrb[0].mxu0
        %v953 = vadd.f32 %v749, %v952
        %v954 = vpop.f32.mrb[0].mxu0
        %955 = vmatprep.mubr.f32.mxu0 0.0
        %956 = vmatmul.mubr.f32.gmra.mrb[0].mxu0 %v724
        %v957 = vpop.f32.mrb[0].mxu0
        %v958 = vadd.f32 %v749, %v957
        %v959 = vpop.f32.mrb[0].mxu0
        %960 = vmatprep.mubr.f32.mxu0 0.0
        %961 = vmatmul.mubr.f32.gmra.mrb[0].mxu0 %v725
        %v962 = vpop.f32.mrb[0].mxu0
        %v963 = vadd.f32 %v749, %v962
        %v964 = vpop.f32.mrb[0].mxu0
        %965 = vmatprep.mubr.f32.mxu0 0.0
        %966 = vmatmul.mubr.f32.gmra.mrb[0].mxu0 %v726
        %v967 = vpop.f32.mrb[0].mxu0
        %v968 = vadd.f32 %v749, %v967
        %v969 = vpop.f32.mrb[0].mxu0
        %970 = vmatprep.mubr.f32.mxu0 0.0
        %971 = vmatmul.mubr.f32.gmra.mrb[0].mxu0 %v727
        %v972 = vpop.f32.mrb[0].mxu0
        %v973 = vadd.f32 %v749, %v972
        %v974 = vpop.f32.mrb[0].mxu0
        %975 = vdwg.mxu0
        %v976 = vmax.f32 %v818, 0.0
        %v977 = vmax.f32 %v823, 0.0
        %v978 = vmax.f32 %v828, 0.0
        %v979 = vmax.f32 %v833, 0.0
        %v980 = vmax.f32 %v838, 0.0
        %v981 = vmax.f32 %v843, 0.0
        %v982 = vmax.f32 %v848, 0.0
        %v983 = vmax.f32 %v853, 0.0
        %v984 = vmax.f32 %v858, 0.0
        %v985 = vmax.f32 %v863, 0.0
        %v986 = vmax.f32 %v868, 0.0
        %v987 = vmax.f32 %v873, 0.0
        %v988 = vmax.f32 %v878, 0.0
        %v989 = vmax.f32 %v883, 0.0
        %v990 = vmax.f32 %v888, 0.0
        %v991 = vmax.f32 %v893, 0.0
        %v992 = vmax.f32 %v898, 0.0
        %v993 = vmax.f32 %v903, 0.0
        %v994 = vmax.f32 %v908, 0.0
        %v995 = vmax.f32 %v913, 0.0
        %v996 = vmax.f32 %v918, 0.0
        %v997 = vmax.f32 %v923, 0.0
        %v998 = vmax.f32 %v928, 0.0
        %v999 = vmax.f32 %v933, 0.0
        %v1000 = vmax.f32 %v938, 0.0
        %v1001 = vmax.f32 %v943, 0.0
        %v1002 = vmax.f32 %v948, 0.0
        %v1003 = vmax.f32 %v953, 0.0
        %v1004 = vmax.f32 %v958, 0.0
        %v1005 = vmax.f32 %v963, 0.0
        %v1006 = vmax.f32 %v968, 0.0
        %v1007 = vmax.f32 %v973, 0.0
        %v1008 = vld [vmem:[%s6] sm:$0xff]
        %v1009 = vld [vmem:[%s6 + $0x8] sm:$0xff]
        %v1010 = vld [vmem:[%s6 + $0x10] sm:$0xff]
        %v1011 = vld [vmem:[%s6 + $0x18] sm:$0xff]
        %v1012 = vld [vmem:[%s6 + $0x20] sm:$0xff]
        %v1013 = vld [vmem:[%s6 + $0x28] sm:$0xff]
        %v1014 = vld [vmem:[%s6 + $0x30] sm:$0xff]
        %v1015 = vld [vmem:[%s6 + $0x38] sm:$0xff]
        %v1016 = vld [vmem:[%s6 + $0x40] sm:$0xff]
        %v1017 = vld [vmem:[%s6 + $0x48] sm:$0xff]
        %v1018 = vld [vmem:[%s6 + $0x50] sm:$0xff]
        %v1019 = vld [vmem:[%s6 + $0x58] sm:$0xff]
        %v1020 = vld [vmem:[%s6 + $0x60] sm:$0xff]
        %v1021 = vld [vmem:[%s6 + $0x68] sm:$0xff]
        %v1022 = vld [vmem:[%s6 + $0x70] sm:$0xff]
        %v1023 = vld [vmem:[%s6 + $0x78] sm:$0xff]
        %v1024 = vld [vmem:[%s7] sm:$0x1]
        %v1026 = vlaneseq
        %v1027 = vshrl.u32 %v1026, 7
        %v1028 = vsub.s32 0, %v1027
        %v1029 = vrot.slane %v1024, %v1028
        %1031 = vmatprep.subr.mxu0 0.0
        %1032 = vmatpush1.msra.mxu0 %v1008
        %1033 = vmatprep.subr.mxu0 0.0
        %1034 = vmatpush1.msra.mxu0 %v1009
        %1035 = vmatprep.subr.mxu0 0.0
        %1036 = vmatpush1.msra.mxu0 %v1010
        %1037 = vmatprep.subr.mxu0 0.0
        %1038 = vmatpush1.msra.mxu0 %v1011
        %1039 = vmatprep.subr.mxu0 0.0
        %1040 = vmatpush1.msra.mxu0 %v1012
        %1041 = vmatprep.subr.mxu0 0.0
        %1042 = vmatpush1.msra.mxu0 %v1013
        %1043 = vmatprep.subr.mxu0 0.0
        %1044 = vmatpush1.msra.mxu0 %v1014
        %1045 = vmatprep.subr.mxu0 0.0
        %1046 = vmatpush1.msra.mxu0 %v1015
        %1047 = vmatprep.subr.mxu0 0.0
        %1048 = vmatpush1.msra.mxu0 %v1016
        %1049 = vmatprep.subr.mxu0 0.0
        %1050 = vmatpush1.msra.mxu0 %v1017
        %1051 = vmatprep.subr.mxu0 0.0
        %1052 = vmatpush1.msra.mxu0 %v1018
        %1053 = vmatprep.subr.mxu0 0.0
        %1054 = vmatpush1.msra.mxu0 %v1019
        %1055 = vmatprep.subr.mxu0 0.0
        %1056 = vmatpush1.msra.mxu0 %v1020
        %1057 = vmatprep.subr.mxu0 0.0
        %1058 = vmatpush1.msra.mxu0 %v1021
        %1059 = vmatprep.subr.mxu0 0.0
        %1060 = vmatpush1.msra.mxu0 %v1022
        %1061 = vmatprep.subr.mxu0 0.0
        %1062 = vmatpush1.msra.mxu0 %v1023
        %1063 = vmatprep.subr.mxu0 0.0
        %1064 = vmatpush1.msra.mxu0 0.0
        %1065 = vmatprep.subr.mxu0 0.0
        %1066 = vmatpush1.msra.mxu0 0.0
        %1067 = vmatprep.subr.mxu0 0.0
        %1068 = vmatpush1.msra.mxu0 0.0
        %1069 = vmatprep.subr.mxu0 0.0
        %1070 = vmatpush1.msra.mxu0 0.0
        %1071 = vmatprep.subr.mxu0 0.0
        %1072 = vmatpush1.msra.mxu0 0.0
        %1073 = vmatprep.subr.mxu0 0.0
        %1074 = vmatpush1.msra.mxu0 0.0
        %1075 = vmatprep.subr.mxu0 0.0
        %1076 = vmatpush1.msra.mxu0 0.0
        %1077 = vmatprep.subr.mxu0 0.0
        %1078 = vmatpush1.msra.mxu0 0.0
        %1079 = vmatprep.subr.mxu0 0.0
        %1080 = vmatpush1.msra.mxu0 0.0
        %1081 = vmatprep.subr.mxu0 0.0
        %1082 = vmatpush1.msra.mxu0 0.0
        %1083 = vmatprep.subr.mxu0 0.0
        %1084 = vmatpush1.msra.mxu0 0.0
        %1085 = vmatprep.subr.mxu0 0.0
        %1086 = vmatpush1.msra.mxu0 0.0
        %1087 = vmatprep.subr.mxu0 0.0
        %1088 = vmatpush1.msra.mxu0 0.0
        %1089 = vmatprep.subr.mxu0 0.0
        %1090 = vmatpush1.msra.mxu0 0.0
        %1091 = vmatprep.subr.mxu0 0.0
        %1092 = vmatpush1.msra.mxu0 0.0
        %1093 = vmatprep.subr.mxu0 0.0
        %1094 = vmatpush1.msra.mxu0 0.0
        %1095 = vmatprep.mubr.f32.mxu0 0.0
        %1096 = vmatmul.mubr.f32.gmra.mrb[0].mxu0 %v976
        %v1097 = vpop.f32.mrb[0].mxu0
        %v1098 = vadd.f32 %v1029, %v1097
        %v1099 = vpop.f32.mrb[0].mxu0
        %1100 = vmatprep.mubr.f32.mxu0 0.0
        %1101 = vmatmul.mubr.f32.gmra.mrb[0].mxu0 %v977
        %v1102 = vpop.f32.mrb[0].mxu0
        %v1103 = vadd.f32 %v1029, %v1102
        %v1104 = vpop.f32.mrb[0].mxu0
        %1105 = vmatprep.mubr.f32.mxu0 0.0
        %1106 = vmatmul.mubr.f32.gmra.mrb[0].mxu0 %v978
        %v1107 = vpop.f32.mrb[0].mxu0
        %v1108 = vadd.f32 %v1029, %v1107
        %v1109 = vpop.f32.mrb[0].mxu0
        %1110 = vmatprep.mubr.f32.mxu0 0.0
        %1111 = vmatmul.mubr.f32.gmra.mrb[0].mxu0 %v979
        %v1112 = vpop.f32.mrb[0].mxu0
        %v1113 = vadd.f32 %v1029, %v1112
        %v1114 = vpop.f32.mrb[0].mxu0
        %1115 = vmatprep.mubr.f32.mxu0 0.0
        %1116 = vmatmul.mubr.f32.gmra.mrb[0].mxu0 %v980
        %v1117 = vpop.f32.mrb[0].mxu0
        %v1118 = vadd.f32 %v1029, %v1117
        %v1119 = vpop.f32.mrb[0].mxu0
        %1120 = vmatprep.mubr.f32.mxu0 0.0
        %1121 = vmatmul.mubr.f32.gmra.mrb[0].mxu0 %v981
        %v1122 = vpop.f32.mrb[0].mxu0
        %v1123 = vadd.f32 %v1029, %v1122
        %v1124 = vpop.f32.mrb[0].mxu0
        %1125 = vmatprep.mubr.f32.mxu0 0.0
        %1126 = vmatmul.mubr.f32.gmra.mrb[0].mxu0 %v982
        %v1127 = vpop.f32.mrb[0].mxu0
        %v1128 = vadd.f32 %v1029, %v1127
        %v1129 = vpop.f32.mrb[0].mxu0
        %1130 = vmatprep.mubr.f32.mxu0 0.0
        %1131 = vmatmul.mubr.f32.gmra.mrb[0].mxu0 %v983
        %v1132 = vpop.f32.mrb[0].mxu0
        %v1133 = vadd.f32 %v1029, %v1132
        %v1134 = vpop.f32.mrb[0].mxu0
        %1135 = vmatprep.mubr.f32.mxu0 0.0
        %1136 = vmatmul.mubr.f32.gmra.mrb[0].mxu0 %v984
        %v1137 = vpop.f32.mrb[0].mxu0
        %v1138 = vadd.f32 %v1029, %v1137
        %v1139 = vpop.f32.mrb[0].mxu0
        %1140 = vmatprep.mubr.f32.mxu0 0.0
        %1141 = vmatmul.mubr.f32.gmra.mrb[0].mxu0 %v985
        %v1142 = vpop.f32.mrb[0].mxu0
        %v1143 = vadd.f32 %v1029, %v1142
        %v1144 = vpop.f32.mrb[0].mxu0
        %1145 = vmatprep.mubr.f32.mxu0 0.0
        %1146 = vmatmul.mubr.f32.gmra.mrb[0].mxu0 %v986
        %v1147 = vpop.f32.mrb[0].mxu0
        %v1148 = vadd.f32 %v1029, %v1147
        %v1149 = vpop.f32.mrb[0].mxu0
        %1150 = vmatprep.mubr.f32.mxu0 0.0
        %1151 = vmatmul.mubr.f32.gmra.mrb[0].mxu0 %v987
        %v1152 = vpop.f32.mrb[0].mxu0
        %v1153 = vadd.f32 %v1029, %v1152
        %v1154 = vpop.f32.mrb[0].mxu0
        %1155 = vmatprep.mubr.f32.mxu0 0.0
        %1156 = vmatmul.mubr.f32.gmra.mrb[0].mxu0 %v988
        %v1157 = vpop.f32.mrb[0].mxu0
        %v1158 = vadd.f32 %v1029, %v1157
        %v1159 = vpop.f32.mrb[0].mxu0
        %1160 = vmatprep.mubr.f32.mxu0 0.0
        %1161 = vmatmul.mubr.f32.gmra.mrb[0].mxu0 %v989
        %v1162 = vpop.f32.mrb[0].mxu0
        %v1163 = vadd.f32 %v1029, %v1162
        %v1164 = vpop.f32.mrb[0].mxu0
        %1165 = vmatprep.mubr.f32.mxu0 0.0
        %1166 = vmatmul.mubr.f32.gmra.mrb[0].mxu0 %v990
        %v1167 = vpop.f32.mrb[0].mxu0
        %v1168 = vadd.f32 %v1029, %v1167
        %v1169 = vpop.f32.mrb[0].mxu0
        %1170 = vmatprep.mubr.f32.mxu0 0.0
        %1171 = vmatmul.mubr.f32.gmra.mrb[0].mxu0 %v991
        %v1172 = vpop.f32.mrb[0].mxu0
        %v1173 = vadd.f32 %v1029, %v1172
        %v1174 = vpop.f32.mrb[0].mxu0
        %1175 = vmatprep.mubr.f32.mxu0 0.0
        %1176 = vmatmul.mubr.f32.gmra.mrb[0].mxu0 %v992
        %v1177 = vpop.f32.mrb[0].mxu0
        %v1178 = vadd.f32 %v1029, %v1177
        %v1179 = vpop.f32.mrb[0].mxu0
        %1180 = vmatprep.mubr.f32.mxu0 0.0
        %1181 = vmatmul.mubr.f32.gmra.mrb[0].mxu0 %v993
        %v1182 = vpop.f32.mrb[0].mxu0
        %v1183 = vadd.f32 %v1029, %v1182
        %v1184 = vpop.f32.mrb[0].mxu0
        %1185 = vmatprep.mubr.f32.mxu0 0.0
        %1186 = vmatmul.mubr.f32.gmra.mrb[0].mxu0 %v994
        %v1187 = vpop.f32.mrb[0].mxu0
        %v1188 = vadd.f32 %v1029, %v1187
        %v1189 = vpop.f32.mrb[0].mxu0
        %1190 = vmatprep.mubr.f32.mxu0 0.0
        %1191 = vmatmul.mubr.f32.gmra.mrb[0].mxu0 %v995
        %v1192 = vpop.f32.mrb[0].mxu0
        %v1193 = vadd.f32 %v1029, %v1192
        %v1194 = vpop.f32.mrb[0].mxu0
        %1195 = vmatprep.mubr.f32.mxu0 0.0
        %1196 = vmatmul.mubr.f32.gmra.mrb[0].mxu0 %v996
        %v1197 = vpop.f32.mrb[0].mxu0
        %v1198 = vadd.f32 %v1029, %v1197
        %v1199 = vpop.f32.mrb[0].mxu0
        %1200 = vmatprep.mubr.f32.mxu0 0.0
        %1201 = vmatmul.mubr.f32.gmra.mrb[0].mxu0 %v997
        %v1202 = vpop.f32.mrb[0].mxu0
        %v1203 = vadd.f32 %v1029, %v1202
        %v1204 = vpop.f32.mrb[0].mxu0
        %1205 = vmatprep.mubr.f32.mxu0 0.0
        %1206 = vmatmul.mubr.f32.gmra.mrb[0].mxu0 %v998
        %v1207 = vpop.f32.mrb[0].mxu0
        %v1208 = vadd.f32 %v1029, %v1207
        %v1209 = vpop.f32.mrb[0].mxu0
        %1210 = vmatprep.mubr.f32.mxu0 0.0
        %1211 = vmatmul.mubr.f32.gmra.mrb[0].mxu0 %v999
        %v1212 = vpop.f32.mrb[0].mxu0
        %v1213 = vadd.f32 %v1029, %v1212
        %v1214 = vpop.f32.mrb[0].mxu0
        %1215 = vmatprep.mubr.f32.mxu0 0.0
        %1216 = vmatmul.mubr.f32.gmra.mrb[0].mxu0 %v1000
        %v1217 = vpop.f32.mrb[0].mxu0
        %v1218 = vadd.f32 %v1029, %v1217
        %v1219 = vpop.f32.mrb[0].mxu0
        %1220 = vmatprep.mubr.f32.mxu0 0.0
        %1221 = vmatmul.mubr.f32.gmra.mrb[0].mxu0 %v1001
        %v1222 = vpop.f32.mrb[0].mxu0
        %v1223 = vadd.f32 %v1029, %v1222
        %v1224 = vpop.f32.mrb[0].mxu0
        %1225 = vmatprep.mubr.f32.mxu0 0.0
        %1226 = vmatmul.mubr.f32.gmra.mrb[0].mxu0 %v1002
        %v1227 = vpop.f32.mrb[0].mxu0
        %v1228 = vadd.f32 %v1029, %v1227
        %v1229 = vpop.f32.mrb[0].mxu0
        %1230 = vmatprep.mubr.f32.mxu0 0.0
        %1231 = vmatmul.mubr.f32.gmra.mrb[0].mxu0 %v1003
        %v1232 = vpop.f32.mrb[0].mxu0
        %v1233 = vadd.f32 %v1029, %v1232
        %v1234 = vpop.f32.mrb[0].mxu0
        %1235 = vmatprep.mubr.f32.mxu0 0.0
        %1236 = vmatmul.mubr.f32.gmra.mrb[0].mxu0 %v1004
        %v1237 = vpop.f32.mrb[0].mxu0
        %v1238 = vadd.f32 %v1029, %v1237
        %v1239 = vpop.f32.mrb[0].mxu0
        %1240 = vmatprep.mubr.f32.mxu0 0.0
        %1241 = vmatmul.mubr.f32.gmra.mrb[0].mxu0 %v1005
        %v1242 = vpop.f32.mrb[0].mxu0
        %v1243 = vadd.f32 %v1029, %v1242
        %v1244 = vpop.f32.mrb[0].mxu0
        %1245 = vmatprep.mubr.f32.mxu0 0.0
        %1246 = vmatmul.mubr.f32.gmra.mrb[0].mxu0 %v1006
        %v1247 = vpop.f32.mrb[0].mxu0
        %v1248 = vadd.f32 %v1029, %v1247
        %v1249 = vpop.f32.mrb[0].mxu0
        %1250 = vmatprep.mubr.f32.mxu0 0.0
        %1251 = vmatmul.mubr.f32.gmra.mrb[0].mxu0 %v1007
        %v1252 = vpop.f32.mrb[0].mxu0
        %v1253 = vadd.f32 %v1029, %v1252
        %v1254 = vpop.f32.mrb[0].mxu0
        %1255 = vdwg.mxu0
        %1256 = vmax.xlane.f32.xlu0 %v1098
        %v1257 = vpop.xlane.xlu0 %1256
        %1258 = vmax.xlane.f32.xlu0 %v1103
        %v1259 = vpop.xlane.xlu0 %1258
        %1260 = vmax.xlane.f32.xlu0 %v1108
        %v1261 = vpop.xlane.xlu0 %1260
        %1262 = vmax.xlane.f32.xlu0 %v1113
        %v1263 = vpop.xlane.xlu0 %1262
        %1264 = vmax.xlane.f32.xlu0 %v1118
        %v1265 = vpop.xlane.xlu0 %1264
        %1266 = vmax.xlane.f32.xlu0 %v1123
        %v1267 = vpop.xlane.xlu0 %1266
        %1268 = vmax.xlane.f32.xlu0 %v1128
        %v1269 = vpop.xlane.xlu0 %1268
        %1270 = vmax.xlane.f32.xlu0 %v1133
        %v1271 = vpop.xlane.xlu0 %1270
        %1272 = vmax.xlane.f32.xlu0 %v1138
        %v1273 = vpop.xlane.xlu0 %1272
        %1274 = vmax.xlane.f32.xlu0 %v1143
        %v1275 = vpop.xlane.xlu0 %1274
        %1276 = vmax.xlane.f32.xlu0 %v1148
        %v1277 = vpop.xlane.xlu0 %1276
        %1278 = vmax.xlane.f32.xlu0 %v1153
        %v1279 = vpop.xlane.xlu0 %1278
        %1280 = vmax.xlane.f32.xlu0 %v1158
        %v1281 = vpop.xlane.xlu0 %1280
        %1282 = vmax.xlane.f32.xlu0 %v1163
        %v1283 = vpop.xlane.xlu0 %1282
        %1284 = vmax.xlane.f32.xlu0 %v1168
        %v1285 = vpop.xlane.xlu0 %1284
        %1286 = vmax.xlane.f32.xlu0 %v1173
        %v1287 = vpop.xlane.xlu0 %1286
        %1288 = vmax.xlane.f32.xlu0 %v1178
        %v1289 = vpop.xlane.xlu0 %1288
        %1290 = vmax.xlane.f32.xlu0 %v1183
        %v1291 = vpop.xlane.xlu0 %1290
        %1292 = vmax.xlane.f32.xlu0 %v1188
        %v1293 = vpop.xlane.xlu0 %1292
        %1294 = vmax.xlane.f32.xlu0 %v1193
        %v1295 = vpop.xlane.xlu0 %1294
        %1296 = vmax.xlane.f32.xlu0 %v1198
        %v1297 = vpop.xlane.xlu0 %1296
        %1298 = vmax.xlane.f32.xlu0 %v1203
        %v1299 = vpop.xlane.xlu0 %1298
        %1300 = vmax.xlane.f32.xlu0 %v1208
        %v1301 = vpop.xlane.xlu0 %1300
        %1302 = vmax.xlane.f32.xlu0 %v1213
        %v1303 = vpop.xlane.xlu0 %1302
        %1304 = vmax.xlane.f32.xlu0 %v1218
        %v1305 = vpop.xlane.xlu0 %1304
        %1306 = vmax.xlane.f32.xlu0 %v1223
        %v1307 = vpop.xlane.xlu0 %1306
        %1308 = vmax.xlane.f32.xlu0 %v1228
        %v1309 = vpop.xlane.xlu0 %1308
        %1310 = vmax.xlane.f32.xlu0 %v1233
        %v1311 = vpop.xlane.xlu0 %1310
        %1312 = vmax.xlane.f32.xlu0 %v1238
        %v1313 = vpop.xlane.xlu0 %1312
        %1314 = vmax.xlane.f32.xlu0 %v1243
        %v1315 = vpop.xlane.xlu0 %1314
        %1316 = vmax.xlane.f32.xlu0 %v1248
        %v1317 = vpop.xlane.xlu0 %1316
        %1318 = vmax.xlane.f32.xlu0 %v1253
        %v1319 = vpop.xlane.xlu0 %1318
        %v1320 = vsub.f32 %v1098, %v1257
        %v1321 = vsub.f32 %v1103, %v1259
        %v1322 = vsub.f32 %v1108, %v1261
        %v1323 = vsub.f32 %v1113, %v1263
        %v1324 = vsub.f32 %v1118, %v1265
        %v1325 = vsub.f32 %v1123, %v1267
        %v1326 = vsub.f32 %v1128, %v1269
        %v1327 = vsub.f32 %v1133, %v1271
        %v1328 = vsub.f32 %v1138, %v1273
        %v1329 = vsub.f32 %v1143, %v1275
        %v1330 = vsub.f32 %v1148, %v1277
        %v1331 = vsub.f32 %v1153, %v1279
        %v1332 = vsub.f32 %v1158, %v1281
        %v1333 = vsub.f32 %v1163, %v1283
        %v1334 = vsub.f32 %v1168, %v1285
        %v1335 = vsub.f32 %v1173, %v1287
        %v1336 = vsub.f32 %v1178, %v1289
        %v1337 = vsub.f32 %v1183, %v1291
        %v1338 = vsub.f32 %v1188, %v1293
        %v1339 = vsub.f32 %v1193, %v1295
        %v1340 = vsub.f32 %v1198, %v1297
        %v1341 = vsub.f32 %v1203, %v1299
        %v1342 = vsub.f32 %v1208, %v1301
        %v1343 = vsub.f32 %v1213, %v1303
        %v1344 = vsub.f32 %v1218, %v1305
        %v1345 = vsub.f32 %v1223, %v1307
        %v1346 = vsub.f32 %v1228, %v1309
        %v1347 = vsub.f32 %v1233, %v1311
        %v1348 = vsub.f32 %v1238, %v1313
        %v1349 = vsub.f32 %v1243, %v1315
        %v1350 = vsub.f32 %v1248, %v1317
        %v1351 = vsub.f32 %v1253, %v1319
        %v1352 = vmul.f32 %v1320, 1.442695
        %v1353 = vpow.pop %v1352
        %v1354 = vmul.f32 %v1321, 1.442695
        %v1355 = vpow.pop %v1354
        %v1356 = vmul.f32 %v1322, 1.442695
        %v1357 = vpow.pop %v1356
        %v1358 = vmul.f32 %v1323, 1.442695
        %v1359 = vpow.pop %v1358
        %v1360 = vmul.f32 %v1324, 1.442695
        %v1361 = vpow.pop %v1360
        %v1362 = vmul.f32 %v1325, 1.442695
        %v1363 = vpow.pop %v1362
        %v1364 = vmul.f32 %v1326, 1.442695
        %v1365 = vpow.pop %v1364
        %v1366 = vmul.f32 %v1327, 1.442695
        %v1367 = vpow.pop %v1366
        %v1368 = vmul.f32 %v1328, 1.442695
        %v1369 = vpow.pop %v1368
        %v1370 = vmul.f32 %v1329, 1.442695
        %v1371 = vpow.pop %v1370
        %v1372 = vmul.f32 %v1330, 1.442695
        %v1373 = vpow.pop %v1372
        %v1374 = vmul.f32 %v1331, 1.442695
        %v1375 = vpow.pop %v1374
        %v1376 = vmul.f32 %v1332, 1.442695
        %v1377 = vpow.pop %v1376
        %v1378 = vmul.f32 %v1333, 1.442695
        %v1379 = vpow.pop %v1378
        %v1380 = vmul.f32 %v1334, 1.442695
        %v1381 = vpow.pop %v1380
        %v1382 = vmul.f32 %v1335, 1.442695
        %v1383 = vpow.pop %v1382
        %v1384 = vmul.f32 %v1336, 1.442695
        %v1385 = vpow.pop %v1384
        %v1386 = vmul.f32 %v1337, 1.442695
        %v1387 = vpow.pop %v1386
        %v1388 = vmul.f32 %v1338, 1.442695
        %v1389 = vpow.pop %v1388
        %v1390 = vmul.f32 %v1339, 1.442695
        %v1391 = vpow.pop %v1390
        %v1392 = vmul.f32 %v1340, 1.442695
        %v1393 = vpow.pop %v1392
        %v1394 = vmul.f32 %v1341, 1.442695
        %v1395 = vpow.pop %v1394
        %v1396 = vmul.f32 %v1342, 1.442695
        %v1397 = vpow.pop %v1396
        %v1398 = vmul.f32 %v1343, 1.442695
        %v1399 = vpow.pop %v1398
        %v1400 = vmul.f32 %v1344, 1.442695
        %v1401 = vpow.pop %v1400
        %v1402 = vmul.f32 %v1345, 1.442695
        %v1403 = vpow.pop %v1402
        %v1404 = vmul.f32 %v1346, 1.442695
        %v1405 = vpow.pop %v1404
        %v1406 = vmul.f32 %v1347, 1.442695
        %v1407 = vpow.pop %v1406
        %v1408 = vmul.f32 %v1348, 1.442695
        %v1409 = vpow.pop %v1408
        %v1410 = vmul.f32 %v1349, 1.442695
        %v1411 = vpow.pop %v1410
        %v1412 = vmul.f32 %v1350, 1.442695
        %v1413 = vpow.pop %v1412
        %v1414 = vmul.f32 %v1351, 1.442695
        %v1415 = vpow.pop %v1414
        %1416 = vadd.xlane.f32.xlu0 %v1353
        %v1417 = vpop.xlane.xlu0 %1416
        %1418 = vadd.xlane.f32.xlu0 %v1355
        %v1419 = vpop.xlane.xlu0 %1418
        %1420 = vadd.xlane.f32.xlu0 %v1357
        %v1421 = vpop.xlane.xlu0 %1420
        %1422 = vadd.xlane.f32.xlu0 %v1359
        %v1423 = vpop.xlane.xlu0 %1422
        %1424 = vadd.xlane.f32.xlu0 %v1361
        %v1425 = vpop.xlane.xlu0 %1424
        %1426 = vadd.xlane.f32.xlu0 %v1363
        %v1427 = vpop.xlane.xlu0 %1426
        %1428 = vadd.xlane.f32.xlu0 %v1365
        %v1429 = vpop.xlane.xlu0 %1428
        %1430 = vadd.xlane.f32.xlu0 %v1367
        %v1431 = vpop.xlane.xlu0 %1430
        %1432 = vadd.xlane.f32.xlu0 %v1369
        %v1433 = vpop.xlane.xlu0 %1432
        %1434 = vadd.xlane.f32.xlu0 %v1371
        %v1435 = vpop.xlane.xlu0 %1434
        %1436 = vadd.xlane.f32.xlu0 %v1373
        %v1437 = vpop.xlane.xlu0 %1436
        %1438 = vadd.xlane.f32.xlu0 %v1375
        %v1439 = vpop.xlane.xlu0 %1438
        %1440 = vadd.xlane.f32.xlu0 %v1377
        %v1441 = vpop.xlane.xlu0 %1440
        %1442 = vadd.xlane.f32.xlu0 %v1379
        %v1443 = vpop.xlane.xlu0 %1442
        %1444 = vadd.xlane.f32.xlu0 %v1381
        %v1445 = vpop.xlane.xlu0 %1444
        %1446 = vadd.xlane.f32.xlu0 %v1383
        %v1447 = vpop.xlane.xlu0 %1446
        %1448 = vadd.xlane.f32.xlu0 %v1385
        %v1449 = vpop.xlane.xlu0 %1448
        %1450 = vadd.xlane.f32.xlu0 %v1387
        %v1451 = vpop.xlane.xlu0 %1450
        %1452 = vadd.xlane.f32.xlu0 %v1389
        %v1453 = vpop.xlane.xlu0 %1452
        %1454 = vadd.xlane.f32.xlu0 %v1391
        %v1455 = vpop.xlane.xlu0 %1454
        %1456 = vadd.xlane.f32.xlu0 %v1393
        %v1457 = vpop.xlane.xlu0 %1456
        %1458 = vadd.xlane.f32.xlu0 %v1395
        %v1459 = vpop.xlane.xlu0 %1458
        %1460 = vadd.xlane.f32.xlu0 %v1397
        %v1461 = vpop.xlane.xlu0 %1460
        %1462 = vadd.xlane.f32.xlu0 %v1399
        %v1463 = vpop.xlane.xlu0 %1462
        %1464 = vadd.xlane.f32.xlu0 %v1401
        %v1465 = vpop.xlane.xlu0 %1464
        %1466 = vadd.xlane.f32.xlu0 %v1403
        %v1467 = vpop.xlane.xlu0 %1466
        %1468 = vadd.xlane.f32.xlu0 %v1405
        %v1469 = vpop.xlane.xlu0 %1468
        %1470 = vadd.xlane.f32.xlu0 %v1407
        %v1471 = vpop.xlane.xlu0 %1470
        %1472 = vadd.xlane.f32.xlu0 %v1409
        %v1473 = vpop.xlane.xlu0 %1472
        %1474 = vadd.xlane.f32.xlu0 %v1411
        %v1475 = vpop.xlane.xlu0 %1474
        %1476 = vadd.xlane.f32.xlu0 %v1413
        %v1477 = vpop.xlane.xlu0 %1476
        %1478 = vadd.xlane.f32.xlu0 %v1415
        %v1479 = vpop.xlane.xlu0 %1478
        %v1480 = vrcp.pop %v1417
        %v1481 = vrcp.pop %v1419
        %v1482 = vrcp.pop %v1421
        %v1483 = vrcp.pop %v1423
        %v1484 = vrcp.pop %v1425
        %v1485 = vrcp.pop %v1427
        %v1486 = vrcp.pop %v1429
        %v1487 = vrcp.pop %v1431
        %v1488 = vrcp.pop %v1433
        %v1489 = vrcp.pop %v1435
        %v1490 = vrcp.pop %v1437
        %v1491 = vrcp.pop %v1439
        %v1492 = vrcp.pop %v1441
        %v1493 = vrcp.pop %v1443
        %v1494 = vrcp.pop %v1445
        %v1495 = vrcp.pop %v1447
        %v1496 = vrcp.pop %v1449
        %v1497 = vrcp.pop %v1451
        %v1498 = vrcp.pop %v1453
        %v1499 = vrcp.pop %v1455
        %v1500 = vrcp.pop %v1457
        %v1501 = vrcp.pop %v1459
        %v1502 = vrcp.pop %v1461
        %v1503 = vrcp.pop %v1463
        %v1504 = vrcp.pop %v1465
        %v1505 = vrcp.pop %v1467
        %v1506 = vrcp.pop %v1469
        %v1507 = vrcp.pop %v1471
        %v1508 = vrcp.pop %v1473
        %v1509 = vrcp.pop %v1475
        %v1510 = vrcp.pop %v1477
        %v1511 = vrcp.pop %v1479
        %v1512 = vld [vmem:[%s326] sm:$0xff]
        %v1513 = vld [vmem:[%s326 + $0x8] sm:$0xff]
        %v1514 = vld [vmem:[%s326 + $0x10] sm:$0xff]
        %v1515 = vld [vmem:[%s326 + $0x18] sm:$0xff]
        %v1516 = vld [vmem:[%s326 + $0x20] sm:$0xff]
        %v1517 = vld [vmem:[%s326 + $0x28] sm:$0xff]
        %v1518 = vld [vmem:[%s326 + $0x30] sm:$0xff]
        %v1519 = vld [vmem:[%s326 + $0x38] sm:$0xff]
        %v1520 = vld [vmem:[%s326 + $0x40] sm:$0xff]
        %v1521 = vld [vmem:[%s326 + $0x48] sm:$0xff]
        %v1522 = vld [vmem:[%s326 + $0x50] sm:$0xff]
        %v1523 = vld [vmem:[%s326 + $0x58] sm:$0xff]
        %v1524 = vld [vmem:[%s326 + $0x60] sm:$0xff]
        %v1525 = vld [vmem:[%s326 + $0x68] sm:$0xff]
        %v1526 = vld [vmem:[%s326 + $0x70] sm:$0xff]
        %v1527 = vld [vmem:[%s326 + $0x78] sm:$0xff]
        %v1528 = vld [vmem:[%s326 + $0x80] sm:$0xff]
        %v1529 = vld [vmem:[%s326 + $0x88] sm:$0xff]
        %v1530 = vld [vmem:[%s326 + $0x90] sm:$0xff]
        %v1531 = vld [vmem:[%s326 + $0x98] sm:$0xff]
        %v1532 = vld [vmem:[%s326 + $0xa0] sm:$0xff]
        %v1533 = vld [vmem:[%s326 + $0xa8] sm:$0xff]
        %v1534 = vld [vmem:[%s326 + $0xb0] sm:$0xff]
        %v1535 = vld [vmem:[%s326 + $0xb8] sm:$0xff]
        %v1536 = vld [vmem:[%s326 + $0xc0] sm:$0xff]
        %v1537 = vld [vmem:[%s326 + $0xc8] sm:$0xff]
        %v1538 = vld [vmem:[%s326 + $0xd0] sm:$0xff]
        %v1539 = vld [vmem:[%s326 + $0xd8] sm:$0xff]
        %v1540 = vld [vmem:[%s326 + $0xe0] sm:$0xff]
        %v1541 = vld [vmem:[%s326 + $0xe8] sm:$0xff]
        %v1542 = vld [vmem:[%s326 + $0xf0] sm:$0xff]
        %v1543 = vld [vmem:[%s326 + $0xf8] sm:$0xff]
        %v1544 = vlaneseq
        %v1545 = vand.u32 %v1544, 127
        %1546 = vset.pattern.permute.xlu0 0
        %1547 = vperm.xlu0 %1546, %v1512
        %v1548 = vpop.permute.xlu0 %1547
        %1549 = vset.pattern.permute.xlu0 0
        %1550 = vperm.xlu0 %1549, %v1513
        %v1551 = vpop.permute.xlu0 %1550
        %1552 = vset.pattern.permute.xlu0 0
        %1553 = vperm.xlu0 %1552, %v1514
        %v1554 = vpop.permute.xlu0 %1553
        %1555 = vset.pattern.permute.xlu0 0
        %1556 = vperm.xlu0 %1555, %v1515
        %v1557 = vpop.permute.xlu0 %1556
        %1558 = vset.pattern.permute.xlu0 0
        %1559 = vperm.xlu0 %1558, %v1516
        %v1560 = vpop.permute.xlu0 %1559
        %1561 = vset.pattern.permute.xlu0 0
        %1562 = vperm.xlu0 %1561, %v1517
        %v1563 = vpop.permute.xlu0 %1562
        %1564 = vset.pattern.permute.xlu0 0
        %1565 = vperm.xlu0 %1564, %v1518
        %v1566 = vpop.permute.xlu0 %1565
        %1567 = vset.pattern.permute.xlu0 0
        %1568 = vperm.xlu0 %1567, %v1519
        %v1569 = vpop.permute.xlu0 %1568
        %1570 = vset.pattern.permute.xlu0 0
        %1571 = vperm.xlu0 %1570, %v1520
        %v1572 = vpop.permute.xlu0 %1571
        %1573 = vset.pattern.permute.xlu0 0
        %1574 = vperm.xlu0 %1573, %v1521
        %v1575 = vpop.permute.xlu0 %1574
        %1576 = vset.pattern.permute.xlu0 0
        %1577 = vperm.xlu0 %1576, %v1522
        %v1578 = vpop.permute.xlu0 %1577
        %1579 = vset.pattern.permute.xlu0 0
        %1580 = vperm.xlu0 %1579, %v1523
        %v1581 = vpop.permute.xlu0 %1580
        %1582 = vset.pattern.permute.xlu0 0
        %1583 = vperm.xlu0 %1582, %v1524
        %v1584 = vpop.permute.xlu0 %1583
        %1585 = vset.pattern.permute.xlu0 0
        %1586 = vperm.xlu0 %1585, %v1525
        %v1587 = vpop.permute.xlu0 %1586
        %1588 = vset.pattern.permute.xlu0 0
        %1589 = vperm.xlu0 %1588, %v1526
        %v1590 = vpop.permute.xlu0 %1589
        %1591 = vset.pattern.permute.xlu0 0
        %1592 = vperm.xlu0 %1591, %v1527
        %v1593 = vpop.permute.xlu0 %1592
        %1594 = vset.pattern.permute.xlu0 0
        %1595 = vperm.xlu0 %1594, %v1528
        %v1596 = vpop.permute.xlu0 %1595
        %1597 = vset.pattern.permute.xlu0 0
        %1598 = vperm.xlu0 %1597, %v1529
        %v1599 = vpop.permute.xlu0 %1598
        %1600 = vset.pattern.permute.xlu0 0
        %1601 = vperm.xlu0 %1600, %v1530
        %v1602 = vpop.permute.xlu0 %1601
        %1603 = vset.pattern.permute.xlu0 0
        %1604 = vperm.xlu0 %1603, %v1531
        %v1605 = vpop.permute.xlu0 %1604
        %1606 = vset.pattern.permute.xlu0 0
        %1607 = vperm.xlu0 %1606, %v1532
        %v1608 = vpop.permute.xlu0 %1607
        %1609 = vset.pattern.permute.xlu0 0
        %1610 = vperm.xlu0 %1609, %v1533
        %v1611 = vpop.permute.xlu0 %1610
        %1612 = vset.pattern.permute.xlu0 0
        %1613 = vperm.xlu0 %1612, %v1534
        %v1614 = vpop.permute.xlu0 %1613
        %1615 = vset.pattern.permute.xlu0 0
        %1616 = vperm.xlu0 %1615, %v1535
        %v1617 = vpop.permute.xlu0 %1616
        %1618 = vset.pattern.permute.xlu0 0
        %1619 = vperm.xlu0 %1618, %v1536
        %v1620 = vpop.permute.xlu0 %1619
        %1621 = vset.pattern.permute.xlu0 0
        %1622 = vperm.xlu0 %1621, %v1537
        %v1623 = vpop.permute.xlu0 %1622
        %1624 = vset.pattern.permute.xlu0 0
        %1625 = vperm.xlu0 %1624, %v1538
        %v1626 = vpop.permute.xlu0 %1625
        %1627 = vset.pattern.permute.xlu0 0
        %1628 = vperm.xlu0 %1627, %v1539
        %v1629 = vpop.permute.xlu0 %1628
        %1630 = vset.pattern.permute.xlu0 0
        %1631 = vperm.xlu0 %1630, %v1540
        %v1632 = vpop.permute.xlu0 %1631
        %1633 = vset.pattern.permute.xlu0 0
        %1634 = vperm.xlu0 %1633, %v1541
        %v1635 = vpop.permute.xlu0 %1634
        %1636 = vset.pattern.permute.xlu0 0
        %1637 = vperm.xlu0 %1636, %v1542
        %v1638 = vpop.permute.xlu0 %1637
        %1639 = vset.pattern.permute.xlu0 0
        %1640 = vperm.xlu0 %1639, %v1543
        %v1641 = vpop.permute.xlu0 %1640
        %vm1642 = vcmp.eq.s32.totalorder %v1545, %v1548
        %vm1643 = vcmp.eq.s32.totalorder %v1545, %v1551
        %vm1644 = vcmp.eq.s32.totalorder %v1545, %v1554
        %vm1645 = vcmp.eq.s32.totalorder %v1545, %v1557
        %vm1646 = vcmp.eq.s32.totalorder %v1545, %v1560
        %vm1647 = vcmp.eq.s32.totalorder %v1545, %v1563
        %vm1648 = vcmp.eq.s32.totalorder %v1545, %v1566
        %vm1649 = vcmp.eq.s32.totalorder %v1545, %v1569
        %vm1650 = vcmp.eq.s32.totalorder %v1545, %v1572
        %vm1651 = vcmp.eq.s32.totalorder %v1545, %v1575
        %vm1652 = vcmp.eq.s32.totalorder %v1545, %v1578
        %vm1653 = vcmp.eq.s32.totalorder %v1545, %v1581
        %vm1654 = vcmp.eq.s32.totalorder %v1545, %v1584
        %vm1655 = vcmp.eq.s32.totalorder %v1545, %v1587
        %vm1656 = vcmp.eq.s32.totalorder %v1545, %v1590
        %vm1657 = vcmp.eq.s32.totalorder %v1545, %v1593
        %vm1658 = vcmp.eq.s32.totalorder %v1545, %v1596
        %vm1659 = vcmp.eq.s32.totalorder %v1545, %v1599
        %vm1660 = vcmp.eq.s32.totalorder %v1545, %v1602
        %vm1661 = vcmp.eq.s32.totalorder %v1545, %v1605
        %vm1662 = vcmp.eq.s32.totalorder %v1545, %v1608
        %vm1663 = vcmp.eq.s32.totalorder %v1545, %v1611
        %vm1664 = vcmp.eq.s32.totalorder %v1545, %v1614
        %vm1665 = vcmp.eq.s32.totalorder %v1545, %v1617
        %vm1666 = vcmp.eq.s32.totalorder %v1545, %v1620
        %vm1667 = vcmp.eq.s32.totalorder %v1545, %v1623
        %vm1668 = vcmp.eq.s32.totalorder %v1545, %v1626
        %vm1669 = vcmp.eq.s32.totalorder %v1545, %v1629
        %vm1670 = vcmp.eq.s32.totalorder %v1545, %v1632
        %vm1671 = vcmp.eq.s32.totalorder %v1545, %v1635
        %vm1672 = vcmp.eq.s32.totalorder %v1545, %v1638
        %vm1673 = vcmp.eq.s32.totalorder %v1545, %v1641
        %v1674 = vsel %vm1642, %v1353, 0.0
        %v1675 = vsel %vm1643, %v1355, 0.0
        %v1676 = vsel %vm1644, %v1357, 0.0
        %v1677 = vsel %vm1645, %v1359, 0.0
        %v1678 = vsel %vm1646, %v1361, 0.0
        %v1679 = vsel %vm1647, %v1363, 0.0
        %v1680 = vsel %vm1648, %v1365, 0.0
        %v1681 = vsel %vm1649, %v1367, 0.0
        %v1682 = vsel %vm1650, %v1369, 0.0
        %v1683 = vsel %vm1651, %v1371, 0.0
        %v1684 = vsel %vm1652, %v1373, 0.0
        %v1685 = vsel %vm1653, %v1375, 0.0
        %v1686 = vsel %vm1654, %v1377, 0.0
        %v1687 = vsel %vm1655, %v1379, 0.0
        %v1688 = vsel %vm1656, %v1381, 0.0
        %v1689 = vsel %vm1657, %v1383, 0.0
        %v1690 = vsel %vm1658, %v1385, 0.0
        %v1691 = vsel %vm1659, %v1387, 0.0
        %v1692 = vsel %vm1660, %v1389, 0.0
        %v1693 = vsel %vm1661, %v1391, 0.0
        %v1694 = vsel %vm1662, %v1393, 0.0
        %v1695 = vsel %vm1663, %v1395, 0.0
        %v1696 = vsel %vm1664, %v1397, 0.0
        %v1697 = vsel %vm1665, %v1399, 0.0
        %v1698 = vsel %vm1666, %v1401, 0.0
        %v1699 = vsel %vm1667, %v1403, 0.0
        %v1700 = vsel %vm1668, %v1405, 0.0
        %v1701 = vsel %vm1669, %v1407, 0.0
        %v1702 = vsel %vm1670, %v1409, 0.0
        %v1703 = vsel %vm1671, %v1411, 0.0
        %v1704 = vsel %vm1672, %v1413, 0.0
        %v1705 = vsel %vm1673, %v1415, 0.0
        %1706 = vadd.xlane.f32.xlu0 %v1674
        %v1707 = vpop.xlane.xlu0 %1706
        %1708 = vadd.xlane.f32.xlu0 %v1675
        %v1709 = vpop.xlane.xlu0 %1708
        %1710 = vadd.xlane.f32.xlu0 %v1676
        %v1711 = vpop.xlane.xlu0 %1710
        %1712 = vadd.xlane.f32.xlu0 %v1677
        %v1713 = vpop.xlane.xlu0 %1712
        %1714 = vadd.xlane.f32.xlu0 %v1678
        %v1715 = vpop.xlane.xlu0 %1714
        %1716 = vadd.xlane.f32.xlu0 %v1679
        %v1717 = vpop.xlane.xlu0 %1716
        %1718 = vadd.xlane.f32.xlu0 %v1680
        %v1719 = vpop.xlane.xlu0 %1718
        %1720 = vadd.xlane.f32.xlu0 %v1681
        %v1721 = vpop.xlane.xlu0 %1720
        %1722 = vadd.xlane.f32.xlu0 %v1682
        %v1723 = vpop.xlane.xlu0 %1722
        %1724 = vadd.xlane.f32.xlu0 %v1683
        %v1725 = vpop.xlane.xlu0 %1724
        %1726 = vadd.xlane.f32.xlu0 %v1684
        %v1727 = vpop.xlane.xlu0 %1726
        %1728 = vadd.xlane.f32.xlu0 %v1685
        %v1729 = vpop.xlane.xlu0 %1728
        %1730 = vadd.xlane.f32.xlu0 %v1686
        %v1731 = vpop.xlane.xlu0 %1730
        %1732 = vadd.xlane.f32.xlu0 %v1687
        %v1733 = vpop.xlane.xlu0 %1732
        %1734 = vadd.xlane.f32.xlu0 %v1688
        %v1735 = vpop.xlane.xlu0 %1734
        %1736 = vadd.xlane.f32.xlu0 %v1689
        %v1737 = vpop.xlane.xlu0 %1736
        %1738 = vadd.xlane.f32.xlu0 %v1690
        %v1739 = vpop.xlane.xlu0 %1738
        %1740 = vadd.xlane.f32.xlu0 %v1691
        %v1741 = vpop.xlane.xlu0 %1740
        %1742 = vadd.xlane.f32.xlu0 %v1692
        %v1743 = vpop.xlane.xlu0 %1742
        %1744 = vadd.xlane.f32.xlu0 %v1693
        %v1745 = vpop.xlane.xlu0 %1744
        %1746 = vadd.xlane.f32.xlu0 %v1694
        %v1747 = vpop.xlane.xlu0 %1746
        %1748 = vadd.xlane.f32.xlu0 %v1695
        %v1749 = vpop.xlane.xlu0 %1748
        %1750 = vadd.xlane.f32.xlu0 %v1696
        %v1751 = vpop.xlane.xlu0 %1750
        %1752 = vadd.xlane.f32.xlu0 %v1697
        %v1753 = vpop.xlane.xlu0 %1752
        %1754 = vadd.xlane.f32.xlu0 %v1698
        %v1755 = vpop.xlane.xlu0 %1754
        %1756 = vadd.xlane.f32.xlu0 %v1699
        %v1757 = vpop.xlane.xlu0 %1756
        %1758 = vadd.xlane.f32.xlu0 %v1700
        %v1759 = vpop.xlane.xlu0 %1758
        %1760 = vadd.xlane.f32.xlu0 %v1701
        %v1761 = vpop.xlane.xlu0 %1760
        %1762 = vadd.xlane.f32.xlu0 %v1702
        %v1763 = vpop.xlane.xlu0 %1762
        %1764 = vadd.xlane.f32.xlu0 %v1703
        %v1765 = vpop.xlane.xlu0 %1764
        %1766 = vadd.xlane.f32.xlu0 %v1704
        %v1767 = vpop.xlane.xlu0 %1766
        %1768 = vadd.xlane.f32.xlu0 %v1705
        %v1769 = vpop.xlane.xlu0 %1768
        %v1770 = vmul.f32 %v1707, %v1480
        %v1771 = vmul.f32 %v1709, %v1481
        %v1772 = vmul.f32 %v1711, %v1482
        %v1773 = vmul.f32 %v1713, %v1483
        %v1774 = vmul.f32 %v1715, %v1484
        %v1775 = vmul.f32 %v1717, %v1485
        %v1776 = vmul.f32 %v1719, %v1486
        %v1777 = vmul.f32 %v1721, %v1487
        %v1778 = vmul.f32 %v1723, %v1488
        %v1779 = vmul.f32 %v1725, %v1489
        %v1780 = vmul.f32 %v1727, %v1490
        %v1781 = vmul.f32 %v1729, %v1491
        %v1782 = vmul.f32 %v1731, %v1492
        %v1783 = vmul.f32 %v1733, %v1493
        %v1784 = vmul.f32 %v1735, %v1494
        %v1785 = vmul.f32 %v1737, %v1495
        %v1786 = vmul.f32 %v1739, %v1496
        %v1787 = vmul.f32 %v1741, %v1497
        %v1788 = vmul.f32 %v1743, %v1498
        %v1789 = vmul.f32 %v1745, %v1499
        %v1790 = vmul.f32 %v1747, %v1500
        %v1791 = vmul.f32 %v1749, %v1501
        %v1792 = vmul.f32 %v1751, %v1502
        %v1793 = vmul.f32 %v1753, %v1503
        %v1794 = vmul.f32 %v1755, %v1504
        %v1795 = vmul.f32 %v1757, %v1505
        %v1796 = vmul.f32 %v1759, %v1506
        %v1797 = vmul.f32 %v1761, %v1507
        %v1798 = vmul.f32 %v1763, %v1508
        %v1799 = vmul.f32 %v1765, %v1509
        %v1800 = vmul.f32 %v1767, %v1510
        %v1801 = vmul.f32 %v1769, %v1511
        %1802 = vxpose.xlu0.b32.start [1/16] %v1770, 128
        %1803 = vxpose.xlu0.b32.cont [2/16] %v1771, 128
        %1804 = vxpose.xlu0.b32.cont [3/16] %v1772, 128
        %1805 = vxpose.xlu0.b32.cont [4/16] %v1773, 128
        %1806 = vxpose.xlu0.b32.cont [5/16] %v1774, 128
        %1807 = vxpose.xlu0.b32.cont [6/16] %v1775, 128
        %1808 = vxpose.xlu0.b32.cont [7/16] %v1776, 128
        %1809 = vxpose.xlu0.b32.cont [8/16] %v1777, 128
        %1810 = vxpose.xlu0.b32.cont [9/16] %v1778, 128
        %1811 = vxpose.xlu0.b32.cont [10/16] %v1779, 128
        %1812 = vxpose.xlu0.b32.cont [11/16] %v1780, 128
        %1813 = vxpose.xlu0.b32.cont [12/16] %v1781, 128
        %1814 = vxpose.xlu0.b32.cont [13/16] %v1782, 128
        %1815 = vxpose.xlu0.b32.cont [14/16] %v1783, 128
        %1816 = vxpose.xlu0.b32.cont [15/16] %v1784, 128
        %1817 = vxpose.xlu0.b32.end [16/16] %v1785, 128
        %v1818 = vpop.trf.xlu0
        %v1819 = vpop.trf.xlu0
        %v1820 = vpop.trf.xlu0
        %v1821 = vpop.trf.xlu0
        %v1822 = vpop.trf.xlu0
        %v1823 = vpop.trf.xlu0
        %v1824 = vpop.trf.xlu0
        %v1825 = vpop.trf.xlu0
        %v1826 = vpop.trf.xlu0
        %v1827 = vpop.trf.xlu0
        %v1828 = vpop.trf.xlu0
        %v1829 = vpop.trf.xlu0
        %v1830 = vpop.trf.xlu0
        %v1831 = vpop.trf.xlu0
        %v1832 = vpop.trf.xlu0
        %v1833 = vpop.trf.xlu0
        %1834 = vxpose.xlu0.b32.start [1/16] %v1786, 128
        %1835 = vxpose.xlu0.b32.cont [2/16] %v1787, 128
        %1836 = vxpose.xlu0.b32.cont [3/16] %v1788, 128
        %1837 = vxpose.xlu0.b32.cont [4/16] %v1789, 128
        %1838 = vxpose.xlu0.b32.cont [5/16] %v1790, 128
        %1839 = vxpose.xlu0.b32.cont [6/16] %v1791, 128
        %1840 = vxpose.xlu0.b32.cont [7/16] %v1792, 128
        %1841 = vxpose.xlu0.b32.cont [8/16] %v1793, 128
        %1842 = vxpose.xlu0.b32.cont [9/16] %v1794, 128
        %1843 = vxpose.xlu0.b32.cont [10/16] %v1795, 128
        %1844 = vxpose.xlu0.b32.cont [11/16] %v1796, 128
        %1845 = vxpose.xlu0.b32.cont [12/16] %v1797, 128
        %1846 = vxpose.xlu0.b32.cont [13/16] %v1798, 128
        %1847 = vxpose.xlu0.b32.cont [14/16] %v1799, 128
        %1848 = vxpose.xlu0.b32.cont [15/16] %v1800, 128
        %1849 = vxpose.xlu0.b32.end [16/16] %v1801, 128
        %v1850 = vpop.trf.xlu0
        %v1851 = vpop.trf.xlu0
        %v1852 = vpop.trf.xlu0
        %v1853 = vpop.trf.xlu0
        %v1854 = vpop.trf.xlu0
        %v1855 = vpop.trf.xlu0
        %v1856 = vpop.trf.xlu0
        %v1857 = vpop.trf.xlu0
        %v1858 = vpop.trf.xlu0
        %v1859 = vpop.trf.xlu0
        %v1860 = vpop.trf.xlu0
        %v1861 = vpop.trf.xlu0
        %v1862 = vpop.trf.xlu0
        %v1863 = vpop.trf.xlu0
        %v1864 = vpop.trf.xlu0
        %v1865 = vpop.trf.xlu0
        %v1868 = vcombine.low %v1818, %v1850
        %v1870 = vunpack.c.l.s4 1966171168
        %v1871 = vunpack.c.0.s8 %v1870
        %v1872 = vlaneseq
        %v1873 = vshrl.u32 %v1872, 7
        %v1874 = vsub.s32 %v1871, %v1873
        %v1875 = vrot.slane %v1868, %v1874
        %v1877 = vunpack.c.l.s4 1966171168
        %v1878 = vunpack.c.0.s8 %v1877
        %v1879 = vlaneseq
        %v1880 = vshrl.u32 %v1879, 7
        %v1881 = vsub.s32 %v1878, %v1880
        %v1882 = vrot.slane %v1875, %v1881
        %v1884 = vlaneseq
        %vm1885 = vcmp.ge.s32.totalorder %v1884, 0
        %vm1886 = vcmp.lt.s32.totalorder %v1884, 256
        %vm1887 = vmand %vm1885, %vm1886
        %1888 = vst.msk [vmem:[%s315] sm:$0x3] %vm1887, %v1882
        %s1889 = sand.u32 %s208, 1
        %s1890 = scalar_lea.sflag [#allocation3], %s1889
        %s1891 = sand.u32 %s208, 1
        %s1892 = smul.addr %s1891, 2
        %s1893 = scalar_lea.vmem [#allocation2], %s1892
        // Predicated region
        $region53: #{tpu_custom_call.1} parent=51 // pred_check
          %p1894 = pneg %p218
        $region54: #{tpu_custom_call.1} parent=51 // pred_check_branch
          %1896 = sbr.rel (%p1894) target = $region56
        $region55: #{tpu_custom_call.1} parent=51 // pred_region
          %s1897 = smul.u32 2, %s22
          %s1899 = ssub.s32 32, 32
          %1900 = vsyncadd %s1890, %s1899
          %s1901 = smul.addr %s1897, 16
          %s1902 = scalar_lea.hbm %s8, %s1901
          %s1904 = sshll.u32 %s1893, 4
          %s1905 = int_to_ptr.vmem [resolvable:$true] %s1904
          %1907 = dma.vmem_to_hbm [thread:$0]  %s1905, 32, %s1902, %s1890
        $region56: #{tpu_custom_call.1} parent=51 // pred_fallthru
          _
      $region52: #{tpu_custom_call.1} parent=5 // pred_fallthru
        _
      %p1908 = scmp.le.s32.totalorder 2, %s17
      // Predicated region
      $region57: #{tpu_custom_call.1} parent=5 // pred_check
        %p1909 = pneg %p1908
      $region58: #{tpu_custom_call.1} parent=5 // pred_check_branch
        %1911 = sbr.rel (%p1909) target = $region60
      $region59: #{tpu_custom_call.1} parent=5 // pred_region
        %s1912 = ssub.s32 %s17, 2
        // Predicated region
        $region61: #{tpu_custom_call.1} parent=59 // pred_check
          %p1913 = pneg %p224
        $region62: #{tpu_custom_call.1} parent=59 // pred_check_branch
          %1915 = sbr.rel (%p1913) target = $region64
        $region63: #{tpu_custom_call.1} parent=59 // pred_region
          %s1916 = sand.u32 %s209, 1
          %s1917 = scalar_lea.sflag [#allocation3], %s1916
          %s1918 = sand.u32 %s209, 1
          %s1919 = smul.addr %s1918, 2
          %s1920 = scalar_lea.vmem [#allocation2], %s1919
          %1921 = dma.done %s1917, 32
        $region64: #{tpu_custom_call.1} parent=59 // pred_fallthru
          _
      $region60: #{tpu_custom_call.1} parent=5 // pred_fallthru
        _
    $region6: #{tpu_custom_call.1} parent=1 // loop_footer
      %s21 = sadd.s32 1, %s17
    $region7: #{tpu_custom_call.1} parent=1 // loop_footer_branch
      %16 = sbr.rel target = $region3
    $region8: #{tpu_custom_call.1} parent=1 // loop_exit
      _
    %1922 = vsyncpa [#allocation3], 1
    %s1923 = scalar_lea.sflag [#allocation3], 1
    %1924 = vsyncpa %s1923, 1

</llo_original>
